<compile_context>
chip_gen: v7x
topology: tpu7x:2x2x1
jax: 0.10.0
libtpu: 0.0.40
codegen_flags: <defaults>
</compile_context>

<pallas_src>
import jax
import jax.numpy as jnp
from jax.experimental import pallas as pl
from jax.experimental.pallas import tpu as pltpu


# ---------------------------------------------------------------------------
# Kernel (feature-major: x (2, TB) -> out (8, TB))
# ---------------------------------------------------------------------------
def _net_kernel(x_ref, cb_ref, w2_ref, w3_ref, out_ref):
    # cb_ref layout (512, 8) f32, column-oriented params:
    #   col 0 rows 0:256 : fused layer-1 weights, input feature 0
    #   col 1 rows 0:256 : fused layer-1 weights, input feature 1
    #   col 2 rows 0:256 : fused layer-1 bias
    #   col 3 rows 0:256 : policy layer-2 bias
    #   col 4 rows 0:256 : value  layer-2 bias
    #   col 5 rows 0:4   : layer-3 bias (3 policy + 1 value), rows 4:8 zero
    x0 = x_ref[0:1, :]                       # (1, TB)
    x1 = x_ref[1:2, :]                       # (1, TB)

    w1c0 = cb_ref[0:256, 0:1]                # (256, 1)
    w1c1 = cb_ref[0:256, 1:2]
    b1   = cb_ref[0:256, 2:3]
    b2p  = cb_ref[0:256, 3:4]
    b2v  = cb_ref[0:256, 4:5]
    b3   = cb_ref[0:8,   5:6]                # (8, 1)

    # ---- fused layer 1 on the VPU (K=2; MXU would be wasted), f32 ----------
    h1 = jnp.maximum(w1c0 * x0 + w1c1 * x1 + b1, 0.0)        # (256, TB) f32
    h1 = h1.astype(jnp.bfloat16)

    # ---- layer 2: per-head dense MXU dots, bf16 in / f32 accumulate --------
    # w2_ref = [wp2.T | wv2.T]  (256, 256) bf16
    h2p = jnp.dot(w2_ref[:, 0:128], h1[0:128, :],
                  preferred_element_type=jnp.float32)         # (256, TB)
    h2v = jnp.dot(w2_ref[:, 128:256], h1[128:256, :],
                  preferred_element_type=jnp.float32)         # (256, TB)
    h2p = jnp.maximum(h2p + b2p, 0.0)
    h2v = jnp.maximum(h2v + b2v, 0.0)

    # ---- layer 3: per-head f32 dots (output precision); rows 0:3 = policy,
    #      row 3 = value, rows 4:8 = 0 ---------------------------------------
    out = (jnp.dot(w3_ref[:, 0:256], h2p, preferred_element_type=jnp.float32)
           + jnp.dot(w3_ref[:, 256:512], h2v, preferred_element_type=jnp.float32)
           + b3)                                              # (8, TB)
    out_ref[...] = out.astype(out_ref.dtype)


# ---------------------------------------------------------------------------
# Wrappers
# ---------------------------------------------------------------------------
def _round_up(n, m):
    return ((n + m - 1) // m) * m


def net_forward_t(x_t, colbuf, w2pack, w3t, *, max_tile=1024):
    """Fast path. x_t: (2, B) f32 (feature-major). Returns (policy (3,B), value (1,B))."""
    _, B = x_t.shape

    # Adaptive lane tile: as large as max_tile, but aim for >=2 grid steps so
    # ("parallel",) shards the batch axis across both TensorCores on v7x.
    tb = max(128, min(max_tile, _round_up(pl.cdiv(B, 2), 128)))
    if tb >= B:
        tb = B                      # single full-width block (no padding at all)
    grid = (pl.cdiv(B, tb),)        # ragged tail block is masked by Pallas

    out = pl.pallas_call(
        _net_kernel,
        out_shape=jax.ShapeDtypeStruct((8, B), jnp.float32),
        grid_spec=pltpu.PrefetchScalarGridSpec(
            num_scalar_prefetch=0,
            grid=grid,
            in_specs=[
                pl.BlockSpec((2, tb), lambda i: (0, i)),       # x batch tiles (lane-dense)
                pl.BlockSpec((512, 8), lambda i: (0, 0)),      # column params (resident)
                pl.BlockSpec((256, 256), lambda i: (0, 0)),    # layer-2 bf16 weights (resident)
                pl.BlockSpec((8, 512), lambda i: (0, 0)),      # layer-3 f32 weights (resident)
            ],
            out_specs=pl.BlockSpec((8, tb), lambda i: (0, i)),  # lane-dense output slab
        ),
        compiler_params=pltpu.CompilerParams(
            dimension_semantics=("parallel",)),
    )(x_t, colbuf, w2pack, w3t)

    return out[0:3, :], out[3:4, :]


def net_forward(x, colbuf, w2pack, w3t, *, max_tile=1024):
    """PyTorch-parity wrapper. x: (B, 2) f32 -> (policy (B,3), value (B,1)).

    The boundary transposes are small XLA ops on narrow arrays; for maximum
    throughput feed feature-major data directly via `net_forward_t`.
    """
    p_t, v_t = net_forward_t(x.T, colbuf, w2pack, w3t, max_tile=max_tile)
    return p_t.T, v_t.T


# ---------------------------------------------------------------------------
# Parameter construction / packing
# ---------------------------------------------------------------------------
def init_params(key):
    """Deterministic synthetic parameters matching the PyTorch module's shapes."""
    dims = {
        "p1": (2, 128), "p2": (128, 256), "p3": (256, 3),
        "v1": (2, 128), "v2": (128, 256), "v3": (256, 1),
    }
    params = {}
    keys = jax.random.split(key, 2 * len(dims))
    for i, (name, (d_in, d_out)) in enumerate(dims.items()):
        bound = 1.0 / (d_in ** 0.5)   # PyTorch Linear default init
        params["w" + name] = jax.random.uniform(
            keys[2 * i], (d_in, d_out), jnp.float32, -bound, bound)
        params["b" + name] = jax.random.uniform(
            keys[2 * i + 1], (1, d_out), jnp.float32, -bound, bound)
    return params


def pack_params(params):
    """Fuse the two heads and pack everything into three resident buffers."""
    # Fused layer 1: (2, 256) weights, (1, 256) bias.
    w1f = jnp.concatenate([params["wp1"], params["wv1"]], axis=1)
    b1f = jnp.concatenate([params["bp1"], params["bv1"]], axis=1)

    # Column-oriented small params.
    colbuf = jnp.zeros((512, 8), jnp.float32)
    colbuf = colbuf.at[0:256, 0].set(w1f[0])
    colbuf = colbuf.at[0:256, 1].set(w1f[1])
    colbuf = colbuf.at[0:256, 2].set(b1f[0])
    colbuf = colbuf.at[0:256, 3].set(params["bp2"][0])
    colbuf = colbuf.at[0:256, 4].set(params["bv2"][0])
    colbuf = colbuf.at[0:3, 5].set(params["bp3"][0])
    colbuf = colbuf.at[3, 5].set(params["bv3"][0, 0])

    # Layer 2: per-head transposed weights packed side by side, bf16.
    w2pack = jnp.concatenate(
        [params["wp2"].T, params["wv2"].T], axis=1).astype(jnp.bfloat16)  # (256, 256)

    # Layer 3: [wp3.T | wv3.T] padded to 8 output rows, f32.
    w3t = jnp.zeros((8, 512), jnp.float32)
    w3t = w3t.at[0:3, 0:256].set(params["wp3"].T)
    w3t = w3t.at[3, 256:512].set(params["wv3"][:, 0])
    return colbuf, w2pack, w3t


# ---------------------------------------------------------------------------
# Pure-JAX reference (unfused, f32) and test driver
# ---------------------------------------------------------------------------
def _reference(x, params):
    def mlp(x, w1, b1, w2, b2, w3, b3):
        h = jnp.maximum(x @ w1 + b1, 0.0)
        h = jnp.maximum(h @ w2 + b2, 0.0)
        return h @ w3 + b3
    p = mlp(x, params["wp1"], params["bp1"], params["wp2"], params["bp2"],
            params["wp3"], params["bp3"])
    v = mlp(x, params["wv1"], params["bv1"], params["wv2"], params["bv2"],
            params["wv3"], params["bv3"])
    return p, v


if __name__ == "__main__":
    key = jax.random.PRNGKey(0)
    k_x, k_p = jax.random.split(key)
    params = init_params(k_p)
    colbuf, w2pack, w3t = pack_params(params)

    # Small batch (single full-width block), PyTorch-parity wrapper.
    B = 8
    x = jax.random.normal(k_x, (B, 2), jnp.float32)
    p, v = net_forward(x, colbuf, w2pack, w3t)
    p, v = jax.block_until_ready((p, v))
    p_ref, v_ref = _reference(x, params)
    assert p.shape == (B, 3) and v.shape == (B, 1)
    # Tolerance relaxed because layer 2 runs in bf16 on the MXU.
    assert jnp.allclose(p, p_ref, atol=3e-2, rtol=3e-2)
    assert jnp.allclose(v, v_ref, atol=3e-2, rtol=3e-2)

    # Larger batch exercising the multi-step grid and the ragged tail block
    # (B=260 -> tiles of 256, last block masked), via the fast feature-major path.
    B2 = 260
    x2 = jax.random.normal(jax.random.PRNGKey(1), (B2, 2), jnp.float32)
    p2t, v2t = net_forward_t(x2.T, colbuf, w2pack, w3t)
    p2t, v2t = jax.block_until_ready((p2t, v2t))
    p2_ref, v2_ref = _reference(x2, params)
    assert p2t.shape == (3, B2) and v2t.shape == (1, B2)
    assert jnp.allclose(p2t.T, p2_ref, atol=3e-2, rtol=3e-2)
    assert jnp.allclose(v2t.T, v2_ref, atol=3e-2, rtol=3e-2)

    # Parity wrapper also checked on the multi-tile batch.
    p2, v2 = net_forward(x2, colbuf, w2pack, w3t)
    p2, v2 = jax.block_until_ready((p2, v2))
    assert jnp.allclose(p2, p2_ref, atol=3e-2, rtol=3e-2)
    assert jnp.allclose(v2, v2_ref, atol=3e-2, rtol=3e-2)

    print("KERNEL_OK")
</pallas_src>

<mosaic_0001>
module attributes {stable_mosaic.version = 11 : i64} {
  func.func @_net_kernel(%arg0: i32, %arg1: memref<2x8xf32, #tpu.memory_space<vmem>>, %arg2: memref<512x8xf32, #tpu.memory_space<vmem>>, %arg3: memref<256x256xbf16, #tpu.memory_space<vmem>>, %arg4: memref<8x512xf32, #tpu.memory_space<vmem>>, %arg5: memref<8x8xf32, #tpu.memory_space<vmem>>) attributes {dimension_semantics = [#tpu.dimension_semantics<parallel>], iteration_bounds = array<i64: 1>, scalar_prefetch = 0 : i64, scratch_operands = 0 : i64, tpu.core_type = #tpu.core_type<tc>, window_params = [{transform_indices = @transform_0, window_bounds = array<i64: 2, 8>}, {pipeline_mode = #tpu.pipeline_mode<synchronous>, transform_indices = @transform_1, window_bounds = array<i64: 512, 8>}, {pipeline_mode = #tpu.pipeline_mode<synchronous>, transform_indices = @transform_2, window_bounds = array<i64: 256, 256>}, {pipeline_mode = #tpu.pipeline_mode<synchronous>, transform_indices = @transform_3, window_bounds = array<i64: 8, 512>}, {transform_indices = @transform_4, window_bounds = array<i64: 8, 8>}]} {
    %c0 = arith.constant 0 : index
    %c0_0 = arith.constant 0 : index
    %0 = vector.load %arg1[%c0, %c0_0] : memref<2x8xf32, #tpu.memory_space<vmem>>, vector<1x8xf32>
    %c1 = arith.constant 1 : index
    %c0_1 = arith.constant 0 : index
    %1 = vector.load %arg1[%c1, %c0_1] : memref<2x8xf32, #tpu.memory_space<vmem>>, vector<1x8xf32>
    %c0_2 = arith.constant 0 : index
    %c0_3 = arith.constant 0 : index
    %2 = vector.load %arg2[%c0_2, %c0_3] : memref<512x8xf32, #tpu.memory_space<vmem>>, vector<256x1xf32>
    %c0_4 = arith.constant 0 : index
    %c1_5 = arith.constant 1 : index
    %3 = vector.load %arg2[%c0_4, %c1_5] : memref<512x8xf32, #tpu.memory_space<vmem>>, vector<256x1xf32>
    %c0_6 = arith.constant 0 : index
    %c2 = arith.constant 2 : index
    %4 = vector.load %arg2[%c0_6, %c2] : memref<512x8xf32, #tpu.memory_space<vmem>>, vector<256x1xf32>
    %c0_7 = arith.constant 0 : index
    %c3 = arith.constant 3 : index
    %5 = vector.load %arg2[%c0_7, %c3] : memref<512x8xf32, #tpu.memory_space<vmem>>, vector<256x1xf32>
    %c0_8 = arith.constant 0 : index
    %c4 = arith.constant 4 : index
    %6 = vector.load %arg2[%c0_8, %c4] : memref<512x8xf32, #tpu.memory_space<vmem>>, vector<256x1xf32>
    %c0_9 = arith.constant 0 : index
    %c5 = arith.constant 5 : index
    %7 = vector.load %arg2[%c0_9, %c5] : memref<512x8xf32, #tpu.memory_space<vmem>>, vector<8x1xf32>
    %8 = vector.broadcast %2 : vector<256x1xf32> to vector<256x8xf32>
    %9 = vector.broadcast %0 : vector<1x8xf32> to vector<256x8xf32>
    %10 = arith.mulf %8, %9 : vector<256x8xf32>
    %11 = vector.broadcast %3 : vector<256x1xf32> to vector<256x8xf32>
    %12 = vector.broadcast %1 : vector<1x8xf32> to vector<256x8xf32>
    %13 = arith.mulf %11, %12 : vector<256x8xf32>
    %14 = arith.addf %10, %13 : vector<256x8xf32>
    %15 = vector.broadcast %4 : vector<256x1xf32> to vector<256x8xf32>
    %16 = arith.addf %14, %15 : vector<256x8xf32>
    %cst = arith.constant 0.000000e+00 : f32
    %17 = vector.broadcast %cst : f32 to vector<256x8xf32>
    %18 = arith.maximumf %16, %17 : vector<256x8xf32>
    %19 = arith.truncf %18 : vector<256x8xf32> to vector<256x8xbf16>
    %c0_10 = arith.constant 0 : index
    %c0_11 = arith.constant 0 : index
    %20 = vector.load %arg3[%c0_10, %c0_11] : memref<256x256xbf16, #tpu.memory_space<vmem>>, vector<256x128xbf16>
    %21 = vector.extract_strided_slice %19 {offsets = [0, 0], sizes = [128, 8], strides = [1, 1]} : vector<256x8xbf16> to vector<128x8xbf16>
    %cst_12 = arith.constant dense<0.000000e+00> : vector<256x8xf32>
    %22 = tpu.matmul %20, %21, %cst_12 {dimension_numbers = #tpu.dot_dimension_numbers<[1], [0], [0], [1], [0, 0, 1, 1], [], []>} : vector<256x128xbf16>, vector<128x8xbf16>, vector<256x8xf32> -> vector<256x8xf32>
    %c0_13 = arith.constant 0 : index
    %c128 = arith.constant 128 : index
    %23 = vector.load %arg3[%c0_13, %c128] : memref<256x256xbf16, #tpu.memory_space<vmem>>, vector<256x128xbf16>
    %24 = vector.extract_strided_slice %19 {offsets = [128, 0], sizes = [128, 8], strides = [1, 1]} : vector<256x8xbf16> to vector<128x8xbf16>
    %cst_14 = arith.constant dense<0.000000e+00> : vector<256x8xf32>
    %25 = tpu.matmul %23, %24, %cst_14 {dimension_numbers = #tpu.dot_dimension_numbers<[1], [0], [0], [1], [0, 0, 1, 1], [], []>} : vector<256x128xbf16>, vector<128x8xbf16>, vector<256x8xf32> -> vector<256x8xf32>
    %26 = vector.broadcast %5 : vector<256x1xf32> to vector<256x8xf32>
    %27 = arith.addf %22, %26 : vector<256x8xf32>
    %cst_15 = arith.constant 0.000000e+00 : f32
    %28 = vector.broadcast %cst_15 : f32 to vector<256x8xf32>
    %29 = arith.maximumf %27, %28 : vector<256x8xf32>
    %30 = vector.broadcast %6 : vector<256x1xf32> to vector<256x8xf32>
    %31 = arith.addf %25, %30 : vector<256x8xf32>
    %cst_16 = arith.constant 0.000000e+00 : f32
    %32 = vector.broadcast %cst_16 : f32 to vector<256x8xf32>
    %33 = arith.maximumf %31, %32 : vector<256x8xf32>
    %c0_17 = arith.constant 0 : index
    %c0_18 = arith.constant 0 : index
    %34 = vector.load %arg4[%c0_17, %c0_18] : memref<8x512xf32, #tpu.memory_space<vmem>>, vector<8x256xf32>
    %cst_19 = arith.constant dense<0.000000e+00> : vector<8x8xf32>
    %35 = tpu.matmul %34, %29, %cst_19 {dimension_numbers = #tpu.dot_dimension_numbers<[1], [0], [0], [1], [0, 0, 1, 1], [], []>} : vector<8x256xf32>, vector<256x8xf32>, vector<8x8xf32> -> vector<8x8xf32>
    %c0_20 = arith.constant 0 : index
    %c256 = arith.constant 256 : index
    %36 = vector.load %arg4[%c0_20, %c256] : memref<8x512xf32, #tpu.memory_space<vmem>>, vector<8x256xf32>
    %cst_21 = arith.constant dense<0.000000e+00> : vector<8x8xf32>
    %37 = tpu.matmul %36, %33, %cst_21 {dimension_numbers = #tpu.dot_dimension_numbers<[1], [0], [0], [1], [0, 0, 1, 1], [], []>} : vector<8x256xf32>, vector<256x8xf32>, vector<8x8xf32> -> vector<8x8xf32>
    %38 = arith.addf %35, %37 : vector<8x8xf32>
    %39 = vector.broadcast %7 : vector<8x1xf32> to vector<8x8xf32>
    %40 = arith.addf %38, %39 : vector<8x8xf32>
    %c0_22 = arith.constant 0 : index
    %c0_23 = arith.constant 0 : index
    %41 = vector.load %arg5[%c0_22, %c0_23] : memref<8x8xf32, #tpu.memory_space<vmem>>, vector<8x8xf32>
    tpu.vector_store %arg5[%c0_22, %c0_23], %40 {strides = array<i32>} : memref<8x8xf32, #tpu.memory_space<vmem>>, vector<8x8xf32>,
    return
  }
  func.func @transform_0(%arg0: i32) -> (i32, i32) {
    %c0_i32 = arith.constant 0 : i32
    %c0_i32_0 = arith.constant 0 : i32
    return %c0_i32, %arg0 : i32, i32
  }
  func.func @transform_1(%arg0: i32) -> (i32, i32) {
    %c0_i32 = arith.constant 0 : i32
    %c0_i32_0 = arith.constant 0 : i32
    %c0_i32_1 = arith.constant 0 : i32
    return %c0_i32, %c0_i32_0 : i32, i32
  }
  func.func @transform_2(%arg0: i32) -> (i32, i32) {
    %c0_i32 = arith.constant 0 : i32
    %c0_i32_0 = arith.constant 0 : i32
    %c0_i32_1 = arith.constant 0 : i32
    return %c0_i32, %c0_i32_0 : i32, i32
  }
  func.func @transform_3(%arg0: i32) -> (i32, i32) {
    %c0_i32 = arith.constant 0 : i32
    %c0_i32_0 = arith.constant 0 : i32
    %c0_i32_1 = arith.constant 0 : i32
    return %c0_i32, %c0_i32_0 : i32, i32
  }
  func.func @transform_4(%arg0: i32) -> (i32, i32) {
    %c0_i32 = arith.constant 0 : i32
    %c0_i32_0 = arith.constant 0 : i32
    return %c0_i32, %arg0 : i32, i32
  }
}

</mosaic_0001>

<llo_original>
// kernel: tpu_custom_call.1
$region0: #{tpu_custom_call.1}
  #allocation0 [shape = 'u32[]', space=smem, size = 0x4, offset = 0x4, fixed_abs, tag = 'smem constant byte address 0x4 - core index']
  #allocation1 [shape = 'u32[144,128]{1,0:T(1,128)}', space=vmem, size = 0x12000, scoped, tag = 'internal scratch']
  %s0 = inlined_call_operand.vmem [shape: f32[2,8], index: 0, kind: input, shape index: {}]
  %s1 = inlined_call_operand.vmem [shape: f32[512,8], index: 1, kind: input, shape index: {}]
  %s2 = inlined_call_operand.vmem [shape: bf16[256,256], index: 2, kind: input, shape index: {}]
  %s3 = inlined_call_operand.vmem [shape: f32[8,512], index: 3, kind: input, shape index: {}]
  %s4 = inlined_call_operand.hbm [shape: f32[8,8], index: 4, kind: output, shape index: {}]
  %s5 = sld [smem:[#allocation0]]
  $region26: #{tpu_custom_call.1} parent=0
    _
  %s7 = ssub.s32 1, %s5
  %s8 = scalar_select 0, %s7, %s5
  $region1: #{tpu_custom_call.1} parent=0
    #allocation2 [shape = 'u8[4096]{0}', space=vmem, size = 0x1000, scoped, tag = 'output window, operand 0, single buffered']
    #allocation3 [shape = 's32[1]{0}', space=sflag, size = 0x4, scoped, tag = 'scoped memory for tpu_custom_call.1']
    %9 = vsyncpa [#allocation3], 0
    // Predicated region
    $region2: #{tpu_custom_call.1} parent=1 // pred_check
      _
    $region3: #{tpu_custom_call.1} parent=1 // pred_check_branch
      %11 = sbr.rel (0) target = $region5
    $region4: #{tpu_custom_call.1} parent=1 // pred_region
      _
    $region5: #{tpu_custom_call.1} parent=1 // pred_fallthru
      _
    // Predicated region
    $region6: #{tpu_custom_call.1} parent=1 // pred_check
      _
    $region7: #{tpu_custom_call.1} parent=1 // pred_check_branch
      %13 = sbr.rel (0) target = $region9
    $region8: #{tpu_custom_call.1} parent=1 // pred_region
      _
    $region9: #{tpu_custom_call.1} parent=1 // pred_fallthru
      _
    // Predicated region
    $region10: #{tpu_custom_call.1} parent=1 // pred_check
      _
    $region11: #{tpu_custom_call.1} parent=1 // pred_check_branch
      %15 = sbr.rel (0) target = $region13
    $region12: #{tpu_custom_call.1} parent=1 // pred_region
      _
    $region13: #{tpu_custom_call.1} parent=1 // pred_fallthru
      _
    // Predicated region
    $region14: #{tpu_custom_call.1} parent=1 // pred_check
      _
    $region15: #{tpu_custom_call.1} parent=1 // pred_check_branch
      %17 = sbr.rel (0) target = $region17
    $region16: #{tpu_custom_call.1} parent=1 // pred_region
      _
    $region17: #{tpu_custom_call.1} parent=1 // pred_fallthru
      _
    %v19 = vld [vmem:[%s0] sm:$0x1]
    %v20 = vld [vmem:[%s0 + $0x1] sm:$0x1]
    %v21 = vld [vmem:[%s1] sm:$0xff]
    %v22 = vld [vmem:[%s1 + $0x8] sm:$0xff]
    %v23 = vld [vmem:[%s1 + $0x10] sm:$0xff]
    %v24 = vld [vmem:[%s1 + $0x18] sm:$0xff]
    %v25 = vld [vmem:[%s1 + $0x20] sm:$0xff]
    %v26 = vld [vmem:[%s1 + $0x28] sm:$0xff]
    %v27 = vld [vmem:[%s1 + $0x30] sm:$0xff]
    %v28 = vld [vmem:[%s1 + $0x38] sm:$0xff]
    %v29 = vld [vmem:[%s1 + $0x40] sm:$0xff]
    %v30 = vld [vmem:[%s1 + $0x48] sm:$0xff]
    %v31 = vld [vmem:[%s1 + $0x50] sm:$0xff]
    %v32 = vld [vmem:[%s1 + $0x58] sm:$0xff]
    %v33 = vld [vmem:[%s1 + $0x60] sm:$0xff]
    %v34 = vld [vmem:[%s1 + $0x68] sm:$0xff]
    %v35 = vld [vmem:[%s1 + $0x70] sm:$0xff]
    %v36 = vld [vmem:[%s1 + $0x78] sm:$0xff]
    %v37 = vld [vmem:[%s1 + $0x80] sm:$0xff]
    %v38 = vld [vmem:[%s1 + $0x88] sm:$0xff]
    %v39 = vld [vmem:[%s1 + $0x90] sm:$0xff]
    %v40 = vld [vmem:[%s1 + $0x98] sm:$0xff]
    %v41 = vld [vmem:[%s1 + $0xa0] sm:$0xff]
    %v42 = vld [vmem:[%s1 + $0xa8] sm:$0xff]
    %v43 = vld [vmem:[%s1 + $0xb0] sm:$0xff]
    %v44 = vld [vmem:[%s1 + $0xb8] sm:$0xff]
    %v45 = vld [vmem:[%s1 + $0xc0] sm:$0xff]
    %v46 = vld [vmem:[%s1 + $0xc8] sm:$0xff]
    %v47 = vld [vmem:[%s1 + $0xd0] sm:$0xff]
    %v48 = vld [vmem:[%s1 + $0xd8] sm:$0xff]
    %v49 = vld [vmem:[%s1 + $0xe0] sm:$0xff]
    %v50 = vld [vmem:[%s1 + $0xe8] sm:$0xff]
    %v51 = vld [vmem:[%s1 + $0xf0] sm:$0xff]
    %v52 = vld [vmem:[%s1 + $0xf8] sm:$0xff]
    %54 = vset.pattern.permute.xlu0 0
    %55 = vperm.xlu0 %54, %v21
    %v56 = vpop.permute.xlu0 %55
    %59 = vset.pattern.permute.xlu0 0
    %60 = vperm.xlu0 %59, %v22
    %v61 = vpop.permute.xlu0 %60
    %64 = vset.pattern.permute.xlu0 0
    %65 = vperm.xlu0 %64, %v23
    %v66 = vpop.permute.xlu0 %65
    %69 = vset.pattern.permute.xlu0 0
    %70 = vperm.xlu0 %69, %v24
    %v71 = vpop.permute.xlu0 %70
    %74 = vset.pattern.permute.xlu0 0
    %75 = vperm.xlu0 %74, %v25
    %v76 = vpop.permute.xlu0 %75
    %79 = vset.pattern.permute.xlu0 0
    %80 = vperm.xlu0 %79, %v26
    %v81 = vpop.permute.xlu0 %80
    %84 = vset.pattern.permute.xlu0 0
    %85 = vperm.xlu0 %84, %v27
    %v86 = vpop.permute.xlu0 %85
    %89 = vset.pattern.permute.xlu0 0
    %90 = vperm.xlu0 %89, %v28
    %v91 = vpop.permute.xlu0 %90
    %94 = vset.pattern.permute.xlu0 0
    %95 = vperm.xlu0 %94, %v29
    %v96 = vpop.permute.xlu0 %95
    %99 = vset.pattern.permute.xlu0 0
    %100 = vperm.xlu0 %99, %v30
    %v101 = vpop.permute.xlu0 %100
    %104 = vset.pattern.permute.xlu0 0
    %105 = vperm.xlu0 %104, %v31
    %v106 = vpop.permute.xlu0 %105
    %109 = vset.pattern.permute.xlu0 0
    %110 = vperm.xlu0 %109, %v32
    %v111 = vpop.permute.xlu0 %110
    %114 = vset.pattern.permute.xlu0 0
    %115 = vperm.xlu0 %114, %v33
    %v116 = vpop.permute.xlu0 %115
    %119 = vset.pattern.permute.xlu0 0
    %120 = vperm.xlu0 %119, %v34
    %v121 = vpop.permute.xlu0 %120
    %124 = vset.pattern.permute.xlu0 0
    %125 = vperm.xlu0 %124, %v35
    %v126 = vpop.permute.xlu0 %125
    %129 = vset.pattern.permute.xlu0 0
    %130 = vperm.xlu0 %129, %v36
    %v131 = vpop.permute.xlu0 %130
    %134 = vset.pattern.permute.xlu0 0
    %135 = vperm.xlu0 %134, %v37
    %v136 = vpop.permute.xlu0 %135
    %139 = vset.pattern.permute.xlu0 0
    %140 = vperm.xlu0 %139, %v38
    %v141 = vpop.permute.xlu0 %140
    %144 = vset.pattern.permute.xlu0 0
    %145 = vperm.xlu0 %144, %v39
    %v146 = vpop.permute.xlu0 %145
    %149 = vset.pattern.permute.xlu0 0
    %150 = vperm.xlu0 %149, %v40
    %v151 = vpop.permute.xlu0 %150
    %154 = vset.pattern.permute.xlu0 0
    %155 = vperm.xlu0 %154, %v41
    %v156 = vpop.permute.xlu0 %155
    %159 = vset.pattern.permute.xlu0 0
    %160 = vperm.xlu0 %159, %v42
    %v161 = vpop.permute.xlu0 %160
    %164 = vset.pattern.permute.xlu0 0
    %165 = vperm.xlu0 %164, %v43
    %v166 = vpop.permute.xlu0 %165
    %169 = vset.pattern.permute.xlu0 0
    %170 = vperm.xlu0 %169, %v44
    %v171 = vpop.permute.xlu0 %170
    %174 = vset.pattern.permute.xlu0 0
    %175 = vperm.xlu0 %174, %v45
    %v176 = vpop.permute.xlu0 %175
    %179 = vset.pattern.permute.xlu0 0
    %180 = vperm.xlu0 %179, %v46
    %v181 = vpop.permute.xlu0 %180
    %184 = vset.pattern.permute.xlu0 0
    %185 = vperm.xlu0 %184, %v47
    %v186 = vpop.permute.xlu0 %185
    %189 = vset.pattern.permute.xlu0 0
    %190 = vperm.xlu0 %189, %v48
    %v191 = vpop.permute.xlu0 %190
    %194 = vset.pattern.permute.xlu0 0
    %195 = vperm.xlu0 %194, %v49
    %v196 = vpop.permute.xlu0 %195
    %199 = vset.pattern.permute.xlu0 0
    %200 = vperm.xlu0 %199, %v50
    %v201 = vpop.permute.xlu0 %200
    %204 = vset.pattern.permute.xlu0 0
    %205 = vperm.xlu0 %204, %v51
    %v206 = vpop.permute.xlu0 %205
    %209 = vset.pattern.permute.xlu0 0
    %210 = vperm.xlu0 %209, %v52
    %v211 = vpop.permute.xlu0 %210
    %v213 = vlaneseq
    %v214 = vshrl.u32 %v213, 7
    %v215 = vsub.s32 0, %v214
    %v216 = vrot.slane %v19, %v215
    %v217 = vmul.f32 %v56, %v216
    %v218 = vmul.f32 %v61, %v216
    %v219 = vmul.f32 %v66, %v216
    %v220 = vmul.f32 %v71, %v216
    %v221 = vmul.f32 %v76, %v216
    %v222 = vmul.f32 %v81, %v216
    %v223 = vmul.f32 %v86, %v216
    %v224 = vmul.f32 %v91, %v216
    %v225 = vmul.f32 %v96, %v216
    %v226 = vmul.f32 %v101, %v216
    %v227 = vmul.f32 %v106, %v216
    %v228 = vmul.f32 %v111, %v216
    %v229 = vmul.f32 %v116, %v216
    %v230 = vmul.f32 %v121, %v216
    %v231 = vmul.f32 %v126, %v216
    %v232 = vmul.f32 %v131, %v216
    %v233 = vmul.f32 %v136, %v216
    %v234 = vmul.f32 %v141, %v216
    %v235 = vmul.f32 %v146, %v216
    %v236 = vmul.f32 %v151, %v216
    %v237 = vmul.f32 %v156, %v216
    %v238 = vmul.f32 %v161, %v216
    %v239 = vmul.f32 %v166, %v216
    %v240 = vmul.f32 %v171, %v216
    %v241 = vmul.f32 %v176, %v216
    %v242 = vmul.f32 %v181, %v216
    %v243 = vmul.f32 %v186, %v216
    %v244 = vmul.f32 %v191, %v216
    %v245 = vmul.f32 %v196, %v216
    %v246 = vmul.f32 %v201, %v216
    %v247 = vmul.f32 %v206, %v216
    %v248 = vmul.f32 %v211, %v216
    %249 = vset.pattern.permute.xlu0 1
    %250 = vperm.xlu0 %249, %v21
    %v251 = vpop.permute.xlu0 %250
    %253 = vset.pattern.permute.xlu0 1
    %254 = vperm.xlu0 %253, %v22
    %v255 = vpop.permute.xlu0 %254
    %257 = vset.pattern.permute.xlu0 1
    %258 = vperm.xlu0 %257, %v23
    %v259 = vpop.permute.xlu0 %258
    %261 = vset.pattern.permute.xlu0 1
    %262 = vperm.xlu0 %261, %v24
    %v263 = vpop.permute.xlu0 %262
    %265 = vset.pattern.permute.xlu0 1
    %266 = vperm.xlu0 %265, %v25
    %v267 = vpop.permute.xlu0 %266
    %269 = vset.pattern.permute.xlu0 1
    %270 = vperm.xlu0 %269, %v26
    %v271 = vpop.permute.xlu0 %270
    %273 = vset.pattern.permute.xlu0 1
    %274 = vperm.xlu0 %273, %v27
    %v275 = vpop.permute.xlu0 %274
    %277 = vset.pattern.permute.xlu0 1
    %278 = vperm.xlu0 %277, %v28
    %v279 = vpop.permute.xlu0 %278
    %281 = vset.pattern.permute.xlu0 1
    %282 = vperm.xlu0 %281, %v29
    %v283 = vpop.permute.xlu0 %282
    %285 = vset.pattern.permute.xlu0 1
    %286 = vperm.xlu0 %285, %v30
    %v287 = vpop.permute.xlu0 %286
    %289 = vset.pattern.permute.xlu0 1
    %290 = vperm.xlu0 %289, %v31
    %v291 = vpop.permute.xlu0 %290
    %293 = vset.pattern.permute.xlu0 1
    %294 = vperm.xlu0 %293, %v32
    %v295 = vpop.permute.xlu0 %294
    %297 = vset.pattern.permute.xlu0 1
    %298 = vperm.xlu0 %297, %v33
    %v299 = vpop.permute.xlu0 %298
    %301 = vset.pattern.permute.xlu0 1
    %302 = vperm.xlu0 %301, %v34
    %v303 = vpop.permute.xlu0 %302
    %305 = vset.pattern.permute.xlu0 1
    %306 = vperm.xlu0 %305, %v35
    %v307 = vpop.permute.xlu0 %306
    %309 = vset.pattern.permute.xlu0 1
    %310 = vperm.xlu0 %309, %v36
    %v311 = vpop.permute.xlu0 %310
    %313 = vset.pattern.permute.xlu0 1
    %314 = vperm.xlu0 %313, %v37
    %v315 = vpop.permute.xlu0 %314
    %317 = vset.pattern.permute.xlu0 1
    %318 = vperm.xlu0 %317, %v38
    %v319 = vpop.permute.xlu0 %318
    %321 = vset.pattern.permute.xlu0 1
    %322 = vperm.xlu0 %321, %v39
    %v323 = vpop.permute.xlu0 %322
    %325 = vset.pattern.permute.xlu0 1
    %326 = vperm.xlu0 %325, %v40
    %v327 = vpop.permute.xlu0 %326
    %329 = vset.pattern.permute.xlu0 1
    %330 = vperm.xlu0 %329, %v41
    %v331 = vpop.permute.xlu0 %330
    %333 = vset.pattern.permute.xlu0 1
    %334 = vperm.xlu0 %333, %v42
    %v335 = vpop.permute.xlu0 %334
    %337 = vset.pattern.permute.xlu0 1
    %338 = vperm.xlu0 %337, %v43
    %v339 = vpop.permute.xlu0 %338
    %341 = vset.pattern.permute.xlu0 1
    %342 = vperm.xlu0 %341, %v44
    %v343 = vpop.permute.xlu0 %342
    %345 = vset.pattern.permute.xlu0 1
    %346 = vperm.xlu0 %345, %v45
    %v347 = vpop.permute.xlu0 %346
    %349 = vset.pattern.permute.xlu0 1
    %350 = vperm.xlu0 %349, %v46
    %v351 = vpop.permute.xlu0 %350
    %353 = vset.pattern.permute.xlu0 1
    %354 = vperm.xlu0 %353, %v47
    %v355 = vpop.permute.xlu0 %354
    %357 = vset.pattern.permute.xlu0 1
    %358 = vperm.xlu0 %357, %v48
    %v359 = vpop.permute.xlu0 %358
    %361 = vset.pattern.permute.xlu0 1
    %362 = vperm.xlu0 %361, %v49
    %v363 = vpop.permute.xlu0 %362
    %365 = vset.pattern.permute.xlu0 1
    %366 = vperm.xlu0 %365, %v50
    %v367 = vpop.permute.xlu0 %366
    %369 = vset.pattern.permute.xlu0 1
    %370 = vperm.xlu0 %369, %v51
    %v371 = vpop.permute.xlu0 %370
    %373 = vset.pattern.permute.xlu0 1
    %374 = vperm.xlu0 %373, %v52
    %v375 = vpop.permute.xlu0 %374
    %v377 = vlaneseq
    %v378 = vshrl.u32 %v377, 7
    %v379 = vsub.s32 0, %v378
    %v380 = vrot.slane %v20, %v379
    %v381 = vmul.f32 %v251, %v380
    %v382 = vmul.f32 %v255, %v380
    %v383 = vmul.f32 %v259, %v380
    %v384 = vmul.f32 %v263, %v380
    %v385 = vmul.f32 %v267, %v380
    %v386 = vmul.f32 %v271, %v380
    %v387 = vmul.f32 %v275, %v380
    %v388 = vmul.f32 %v279, %v380
    %v389 = vmul.f32 %v283, %v380
    %v390 = vmul.f32 %v287, %v380
    %v391 = vmul.f32 %v291, %v380
    %v392 = vmul.f32 %v295, %v380
    %v393 = vmul.f32 %v299, %v380
    %v394 = vmul.f32 %v303, %v380
    %v395 = vmul.f32 %v307, %v380
    %v396 = vmul.f32 %v311, %v380
    %v397 = vmul.f32 %v315, %v380
    %v398 = vmul.f32 %v319, %v380
    %v399 = vmul.f32 %v323, %v380
    %v400 = vmul.f32 %v327, %v380
    %v401 = vmul.f32 %v331, %v380
    %v402 = vmul.f32 %v335, %v380
    %v403 = vmul.f32 %v339, %v380
    %v404 = vmul.f32 %v343, %v380
    %v405 = vmul.f32 %v347, %v380
    %v406 = vmul.f32 %v351, %v380
    %v407 = vmul.f32 %v355, %v380
    %v408 = vmul.f32 %v359, %v380
    %v409 = vmul.f32 %v363, %v380
    %v410 = vmul.f32 %v367, %v380
    %v411 = vmul.f32 %v371, %v380
    %v412 = vmul.f32 %v375, %v380
    %v413 = vadd.f32 %v217, %v381
    %v414 = vadd.f32 %v218, %v382
    %v415 = vadd.f32 %v219, %v383
    %v416 = vadd.f32 %v220, %v384
    %v417 = vadd.f32 %v221, %v385
    %v418 = vadd.f32 %v222, %v386
    %v419 = vadd.f32 %v223, %v387
    %v420 = vadd.f32 %v224, %v388
    %v421 = vadd.f32 %v225, %v389
    %v422 = vadd.f32 %v226, %v390
    %v423 = vadd.f32 %v227, %v391
    %v424 = vadd.f32 %v228, %v392
    %v425 = vadd.f32 %v229, %v393
    %v426 = vadd.f32 %v230, %v394
    %v427 = vadd.f32 %v231, %v395
    %v428 = vadd.f32 %v232, %v396
    %v429 = vadd.f32 %v233, %v397
    %v430 = vadd.f32 %v234, %v398
    %v431 = vadd.f32 %v235, %v399
    %v432 = vadd.f32 %v236, %v400
    %v433 = vadd.f32 %v237, %v401
    %v434 = vadd.f32 %v238, %v402
    %v435 = vadd.f32 %v239, %v403
    %v436 = vadd.f32 %v240, %v404
    %v437 = vadd.f32 %v241, %v405
    %v438 = vadd.f32 %v242, %v406
    %v439 = vadd.f32 %v243, %v407
    %v440 = vadd.f32 %v244, %v408
    %v441 = vadd.f32 %v245, %v409
    %v442 = vadd.f32 %v246, %v410
    %v443 = vadd.f32 %v247, %v411
    %v444 = vadd.f32 %v248, %v412
    %445 = vset.pattern.permute.xlu0 2
    %446 = vperm.xlu0 %445, %v21
    %v447 = vpop.permute.xlu0 %446
    %449 = vset.pattern.permute.xlu0 2
    %450 = vperm.xlu0 %449, %v22
    %v451 = vpop.permute.xlu0 %450
    %453 = vset.pattern.permute.xlu0 2
    %454 = vperm.xlu0 %453, %v23
    %v455 = vpop.permute.xlu0 %454
    %457 = vset.pattern.permute.xlu0 2
    %458 = vperm.xlu0 %457, %v24
    %v459 = vpop.permute.xlu0 %458
    %461 = vset.pattern.permute.xlu0 2
    %462 = vperm.xlu0 %461, %v25
    %v463 = vpop.permute.xlu0 %462
    %465 = vset.pattern.permute.xlu0 2
    %466 = vperm.xlu0 %465, %v26
    %v467 = vpop.permute.xlu0 %466
    %469 = vset.pattern.permute.xlu0 2
    %470 = vperm.xlu0 %469, %v27
    %v471 = vpop.permute.xlu0 %470
    %473 = vset.pattern.permute.xlu0 2
    %474 = vperm.xlu0 %473, %v28
    %v475 = vpop.permute.xlu0 %474
    %477 = vset.pattern.permute.xlu0 2
    %478 = vperm.xlu0 %477, %v29
    %v479 = vpop.permute.xlu0 %478
    %481 = vset.pattern.permute.xlu0 2
    %482 = vperm.xlu0 %481, %v30
    %v483 = vpop.permute.xlu0 %482
    %485 = vset.pattern.permute.xlu0 2
    %486 = vperm.xlu0 %485, %v31
    %v487 = vpop.permute.xlu0 %486
    %489 = vset.pattern.permute.xlu0 2
    %490 = vperm.xlu0 %489, %v32
    %v491 = vpop.permute.xlu0 %490
    %493 = vset.pattern.permute.xlu0 2
    %494 = vperm.xlu0 %493, %v33
    %v495 = vpop.permute.xlu0 %494
    %497 = vset.pattern.permute.xlu0 2
    %498 = vperm.xlu0 %497, %v34
    %v499 = vpop.permute.xlu0 %498
    %501 = vset.pattern.permute.xlu0 2
    %502 = vperm.xlu0 %501, %v35
    %v503 = vpop.permute.xlu0 %502
    %505 = vset.pattern.permute.xlu0 2
    %506 = vperm.xlu0 %505, %v36
    %v507 = vpop.permute.xlu0 %506
    %509 = vset.pattern.permute.xlu0 2
    %510 = vperm.xlu0 %509, %v37
    %v511 = vpop.permute.xlu0 %510
    %513 = vset.pattern.permute.xlu0 2
    %514 = vperm.xlu0 %513, %v38
    %v515 = vpop.permute.xlu0 %514
    %517 = vset.pattern.permute.xlu0 2
    %518 = vperm.xlu0 %517, %v39
    %v519 = vpop.permute.xlu0 %518
    %521 = vset.pattern.permute.xlu0 2
    %522 = vperm.xlu0 %521, %v40
    %v523 = vpop.permute.xlu0 %522
    %525 = vset.pattern.permute.xlu0 2
    %526 = vperm.xlu0 %525, %v41
    %v527 = vpop.permute.xlu0 %526
    %529 = vset.pattern.permute.xlu0 2
    %530 = vperm.xlu0 %529, %v42
    %v531 = vpop.permute.xlu0 %530
    %533 = vset.pattern.permute.xlu0 2
    %534 = vperm.xlu0 %533, %v43
    %v535 = vpop.permute.xlu0 %534
    %537 = vset.pattern.permute.xlu0 2
    %538 = vperm.xlu0 %537, %v44
    %v539 = vpop.permute.xlu0 %538
    %541 = vset.pattern.permute.xlu0 2
    %542 = vperm.xlu0 %541, %v45
    %v543 = vpop.permute.xlu0 %542
    %545 = vset.pattern.permute.xlu0 2
    %546 = vperm.xlu0 %545, %v46
    %v547 = vpop.permute.xlu0 %546
    %549 = vset.pattern.permute.xlu0 2
    %550 = vperm.xlu0 %549, %v47
    %v551 = vpop.permute.xlu0 %550
    %553 = vset.pattern.permute.xlu0 2
    %554 = vperm.xlu0 %553, %v48
    %v555 = vpop.permute.xlu0 %554
    %557 = vset.pattern.permute.xlu0 2
    %558 = vperm.xlu0 %557, %v49
    %v559 = vpop.permute.xlu0 %558
    %561 = vset.pattern.permute.xlu0 2
    %562 = vperm.xlu0 %561, %v50
    %v563 = vpop.permute.xlu0 %562
    %565 = vset.pattern.permute.xlu0 2
    %566 = vperm.xlu0 %565, %v51
    %v567 = vpop.permute.xlu0 %566
    %569 = vset.pattern.permute.xlu0 2
    %570 = vperm.xlu0 %569, %v52
    %v571 = vpop.permute.xlu0 %570
    %v573 = vadd.f32 %v413, %v447
    %v574 = vadd.f32 %v414, %v451
    %v575 = vadd.f32 %v415, %v455
    %v576 = vadd.f32 %v416, %v459
    %v577 = vadd.f32 %v417, %v463
    %v578 = vadd.f32 %v418, %v467
    %v579 = vadd.f32 %v419, %v471
    %v580 = vadd.f32 %v420, %v475
    %v581 = vadd.f32 %v421, %v479
    %v582 = vadd.f32 %v422, %v483
    %v583 = vadd.f32 %v423, %v487
    %v584 = vadd.f32 %v424, %v491
    %v585 = vadd.f32 %v425, %v495
    %v586 = vadd.f32 %v426, %v499
    %v587 = vadd.f32 %v427, %v503
    %v588 = vadd.f32 %v428, %v507
    %v589 = vadd.f32 %v429, %v511
    %v590 = vadd.f32 %v430, %v515
    %v591 = vadd.f32 %v431, %v519
    %v592 = vadd.f32 %v432, %v523
    %v593 = vadd.f32 %v433, %v527
    %v594 = vadd.f32 %v434, %v531
    %v595 = vadd.f32 %v435, %v535
    %v596 = vadd.f32 %v436, %v539
    %v597 = vadd.f32 %v437, %v543
    %v598 = vadd.f32 %v438, %v547
    %v599 = vadd.f32 %v439, %v551
    %v600 = vadd.f32 %v440, %v555
    %v601 = vadd.f32 %v441, %v559
    %v602 = vadd.f32 %v442, %v563
    %v603 = vadd.f32 %v443, %v567
    %v604 = vadd.f32 %v444, %v571
    %v605 = vmax.f32 %v573, 0.0
    %v606 = vmax.f32 %v574, 0.0
    %v607 = vmax.f32 %v575, 0.0
    %v608 = vmax.f32 %v576, 0.0
    %v609 = vmax.f32 %v577, 0.0
    %v610 = vmax.f32 %v578, 0.0
    %v611 = vmax.f32 %v579, 0.0
    %v612 = vmax.f32 %v580, 0.0
    %v613 = vmax.f32 %v581, 0.0
    %v614 = vmax.f32 %v582, 0.0
    %v615 = vmax.f32 %v583, 0.0
    %v616 = vmax.f32 %v584, 0.0
    %v617 = vmax.f32 %v585, 0.0
    %v618 = vmax.f32 %v586, 0.0
    %v619 = vmax.f32 %v587, 0.0
    %v620 = vmax.f32 %v588, 0.0
    %v621 = vmax.f32 %v589, 0.0
    %v622 = vmax.f32 %v590, 0.0
    %v623 = vmax.f32 %v591, 0.0
    %v624 = vmax.f32 %v592, 0.0
    %v625 = vmax.f32 %v593, 0.0
    %v626 = vmax.f32 %v594, 0.0
    %v627 = vmax.f32 %v595, 0.0
    %v628 = vmax.f32 %v596, 0.0
    %v629 = vmax.f32 %v597, 0.0
    %v630 = vmax.f32 %v598, 0.0
    %v631 = vmax.f32 %v599, 0.0
    %v632 = vmax.f32 %v600, 0.0
    %v633 = vmax.f32 %v601, 0.0
    %v634 = vmax.f32 %v602, 0.0
    %v635 = vmax.f32 %v603, 0.0
    %v636 = vmax.f32 %v604, 0.0
    %v637 = vpack.c.bf16 %v606, %v605
    %v638 = vpack.c.bf16 %v608, %v607
    %v639 = vpack.c.bf16 %v610, %v609
    %v640 = vpack.c.bf16 %v612, %v611
    %v641 = vpack.c.bf16 %v614, %v613
    %v642 = vpack.c.bf16 %v616, %v615
    %v643 = vpack.c.bf16 %v618, %v617
    %v644 = vpack.c.bf16 %v620, %v619
    %v645 = vpack.c.bf16 %v622, %v621
    %v646 = vpack.c.bf16 %v624, %v623
    %v647 = vpack.c.bf16 %v626, %v625
    %v648 = vpack.c.bf16 %v628, %v627
    %v649 = vpack.c.bf16 %v630, %v629
    %v650 = vpack.c.bf16 %v632, %v631
    %v651 = vpack.c.bf16 %v634, %v633
    %v652 = vpack.c.bf16 %v636, %v635
    %v653 = vld [vmem:[%s2] sm:$0xf]
    %v654 = vld [vmem:[%s2 + $0x8] sm:$0xf]
    %v655 = vld [vmem:[%s2 + $0x10] sm:$0xf]
    %v656 = vld [vmem:[%s2 + $0x18] sm:$0xf]
    %v657 = vld [vmem:[%s2 + $0x20] sm:$0xf]
    %v658 = vld [vmem:[%s2 + $0x28] sm:$0xf]
    %v659 = vld [vmem:[%s2 + $0x30] sm:$0xf]
    %v660 = vld [vmem:[%s2 + $0x38] sm:$0xf]
    %v661 = vld [vmem:[%s2 + $0x40] sm:$0xf]
    %v662 = vld [vmem:[%s2 + $0x48] sm:$0xf]
    %v663 = vld [vmem:[%s2 + $0x50] sm:$0xf]
    %v664 = vld [vmem:[%s2 + $0x58] sm:$0xf]
    %v665 = vld [vmem:[%s2 + $0x60] sm:$0xf]
    %v666 = vld [vmem:[%s2 + $0x68] sm:$0xf]
    %v667 = vld [vmem:[%s2 + $0x70] sm:$0xf]
    %v668 = vld [vmem:[%s2 + $0x78] sm:$0xf]
    %v669 = vld [vmem:[%s2 + $0x80] sm:$0xf]
    %v670 = vld [vmem:[%s2 + $0x88] sm:$0xf]
    %v671 = vld [vmem:[%s2 + $0x90] sm:$0xf]
    %v672 = vld [vmem:[%s2 + $0x98] sm:$0xf]
    %v673 = vld [vmem:[%s2 + $0xa0] sm:$0xf]
    %v674 = vld [vmem:[%s2 + $0xa8] sm:$0xf]
    %v675 = vld [vmem:[%s2 + $0xb0] sm:$0xf]
    %v676 = vld [vmem:[%s2 + $0xb8] sm:$0xf]
    %v677 = vld [vmem:[%s2 + $0xc0] sm:$0xf]
    %v678 = vld [vmem:[%s2 + $0xc8] sm:$0xf]
    %v679 = vld [vmem:[%s2 + $0xd0] sm:$0xf]
    %v680 = vld [vmem:[%s2 + $0xd8] sm:$0xf]
    %v681 = vld [vmem:[%s2 + $0xe0] sm:$0xf]
    %v682 = vld [vmem:[%s2 + $0xe8] sm:$0xf]
    %v683 = vld [vmem:[%s2 + $0xf0] sm:$0xf]
    %v684 = vld [vmem:[%s2 + $0xf8] sm:$0xf]
    %v685 = vld [vmem:[%s2 + $0x4] sm:$0xf]
    %v686 = vld [vmem:[%s2 + $0xc] sm:$0xf]
    %v687 = vld [vmem:[%s2 + $0x14] sm:$0xf]
    %v688 = vld [vmem:[%s2 + $0x1c] sm:$0xf]
    %v689 = vld [vmem:[%s2 + $0x24] sm:$0xf]
    %v690 = vld [vmem:[%s2 + $0x2c] sm:$0xf]
    %v691 = vld [vmem:[%s2 + $0x34] sm:$0xf]
    %v692 = vld [vmem:[%s2 + $0x3c] sm:$0xf]
    %v693 = vld [vmem:[%s2 + $0x44] sm:$0xf]
    %v694 = vld [vmem:[%s2 + $0x4c] sm:$0xf]
    %v695 = vld [vmem:[%s2 + $0x54] sm:$0xf]
    %v696 = vld [vmem:[%s2 + $0x5c] sm:$0xf]
    %v697 = vld [vmem:[%s2 + $0x64] sm:$0xf]
    %v698 = vld [vmem:[%s2 + $0x6c] sm:$0xf]
    %v699 = vld [vmem:[%s2 + $0x74] sm:$0xf]
    %v700 = vld [vmem:[%s2 + $0x7c] sm:$0xf]
    %v701 = vld [vmem:[%s2 + $0x84] sm:$0xf]
    %v702 = vld [vmem:[%s2 + $0x8c] sm:$0xf]
    %v703 = vld [vmem:[%s2 + $0x94] sm:$0xf]
    %v704 = vld [vmem:[%s2 + $0x9c] sm:$0xf]
    %v705 = vld [vmem:[%s2 + $0xa4] sm:$0xf]
    %v706 = vld [vmem:[%s2 + $0xac] sm:$0xf]
    %v707 = vld [vmem:[%s2 + $0xb4] sm:$0xf]
    %v708 = vld [vmem:[%s2 + $0xbc] sm:$0xf]
    %v709 = vld [vmem:[%s2 + $0xc4] sm:$0xf]
    %v710 = vld [vmem:[%s2 + $0xcc] sm:$0xf]
    %v711 = vld [vmem:[%s2 + $0xd4] sm:$0xf]
    %v712 = vld [vmem:[%s2 + $0xdc] sm:$0xf]
    %v713 = vld [vmem:[%s2 + $0xe4] sm:$0xf]
    %v714 = vld [vmem:[%s2 + $0xec] sm:$0xf]
    %v715 = vld [vmem:[%s2 + $0xf4] sm:$0xf]
    %v716 = vld [vmem:[%s2 + $0xfc] sm:$0xf]
    %717 = vset.pattern.permute.xlu0 3
    %718 = vperm.xlu0 %717, %v21
    %v719 = vpop.permute.xlu0 %718
    %721 = vset.pattern.permute.xlu0 3
    %722 = vperm.xlu0 %721, %v22
    %v723 = vpop.permute.xlu0 %722
    %725 = vset.pattern.permute.xlu0 3
    %726 = vperm.xlu0 %725, %v23
    %v727 = vpop.permute.xlu0 %726
    %729 = vset.pattern.permute.xlu0 3
    %730 = vperm.xlu0 %729, %v24
    %v731 = vpop.permute.xlu0 %730
    %733 = vset.pattern.permute.xlu0 3
    %734 = vperm.xlu0 %733, %v25
    %v735 = vpop.permute.xlu0 %734
    %737 = vset.pattern.permute.xlu0 3
    %738 = vperm.xlu0 %737, %v26
    %v739 = vpop.permute.xlu0 %738
    %741 = vset.pattern.permute.xlu0 3
    %742 = vperm.xlu0 %741, %v27
    %v743 = vpop.permute.xlu0 %742
    %745 = vset.pattern.permute.xlu0 3
    %746 = vperm.xlu0 %745, %v28
    %v747 = vpop.permute.xlu0 %746
    %749 = vset.pattern.permute.xlu0 3
    %750 = vperm.xlu0 %749, %v29
    %v751 = vpop.permute.xlu0 %750
    %753 = vset.pattern.permute.xlu0 3
    %754 = vperm.xlu0 %753, %v30
    %v755 = vpop.permute.xlu0 %754
    %757 = vset.pattern.permute.xlu0 3
    %758 = vperm.xlu0 %757, %v31
    %v759 = vpop.permute.xlu0 %758
    %761 = vset.pattern.permute.xlu0 3
    %762 = vperm.xlu0 %761, %v32
    %v763 = vpop.permute.xlu0 %762
    %765 = vset.pattern.permute.xlu0 3
    %766 = vperm.xlu0 %765, %v33
    %v767 = vpop.permute.xlu0 %766
    %769 = vset.pattern.permute.xlu0 3
    %770 = vperm.xlu0 %769, %v34
    %v771 = vpop.permute.xlu0 %770
    %773 = vset.pattern.permute.xlu0 3
    %774 = vperm.xlu0 %773, %v35
    %v775 = vpop.permute.xlu0 %774
    %777 = vset.pattern.permute.xlu0 3
    %778 = vperm.xlu0 %777, %v36
    %v779 = vpop.permute.xlu0 %778
    %781 = vset.pattern.permute.xlu0 3
    %782 = vperm.xlu0 %781, %v37
    %v783 = vpop.permute.xlu0 %782
    %785 = vset.pattern.permute.xlu0 3
    %786 = vperm.xlu0 %785, %v38
    %v787 = vpop.permute.xlu0 %786
    %789 = vset.pattern.permute.xlu0 3
    %790 = vperm.xlu0 %789, %v39
    %v791 = vpop.permute.xlu0 %790
    %793 = vset.pattern.permute.xlu0 3
    %794 = vperm.xlu0 %793, %v40
    %v795 = vpop.permute.xlu0 %794
    %797 = vset.pattern.permute.xlu0 3
    %798 = vperm.xlu0 %797, %v41
    %v799 = vpop.permute.xlu0 %798
    %801 = vset.pattern.permute.xlu0 3
    %802 = vperm.xlu0 %801, %v42
    %v803 = vpop.permute.xlu0 %802
    %805 = vset.pattern.permute.xlu0 3
    %806 = vperm.xlu0 %805, %v43
    %v807 = vpop.permute.xlu0 %806
    %809 = vset.pattern.permute.xlu0 3
    %810 = vperm.xlu0 %809, %v44
    %v811 = vpop.permute.xlu0 %810
    %813 = vset.pattern.permute.xlu0 3
    %814 = vperm.xlu0 %813, %v45
    %v815 = vpop.permute.xlu0 %814
    %817 = vset.pattern.permute.xlu0 3
    %818 = vperm.xlu0 %817, %v46
    %v819 = vpop.permute.xlu0 %818
    %821 = vset.pattern.permute.xlu0 3
    %822 = vperm.xlu0 %821, %v47
    %v823 = vpop.permute.xlu0 %822
    %825 = vset.pattern.permute.xlu0 3
    %826 = vperm.xlu0 %825, %v48
    %v827 = vpop.permute.xlu0 %826
    %829 = vset.pattern.permute.xlu0 3
    %830 = vperm.xlu0 %829, %v49
    %v831 = vpop.permute.xlu0 %830
    %833 = vset.pattern.permute.xlu0 3
    %834 = vperm.xlu0 %833, %v50
    %v835 = vpop.permute.xlu0 %834
    %837 = vset.pattern.permute.xlu0 3
    %838 = vperm.xlu0 %837, %v51
    %v839 = vpop.permute.xlu0 %838
    %841 = vset.pattern.permute.xlu0 3
    %842 = vperm.xlu0 %841, %v52
    %v843 = vpop.permute.xlu0 %842
    %v877 = vunpack.c.l.b16 %v653
    %v878 = vunpack.c.l.b16 %v654
    %v879 = vunpack.c.l.b16 %v655
    %v880 = vunpack.c.l.b16 %v656
    %v881 = vunpack.c.l.b16 %v657
    %v882 = vunpack.c.l.b16 %v658
    %v883 = vunpack.c.l.b16 %v659
    %v884 = vunpack.c.l.b16 %v660
    %v885 = vunpack.c.l.b16 %v661
    %v886 = vunpack.c.l.b16 %v662
    %v887 = vunpack.c.l.b16 %v663
    %v888 = vunpack.c.l.b16 %v664
    %v889 = vunpack.c.l.b16 %v665
    %v890 = vunpack.c.l.b16 %v666
    %v891 = vunpack.c.l.b16 %v667
    %v892 = vunpack.c.l.b16 %v668
    %v893 = vunpack.c.l.b16 %v669
    %v894 = vunpack.c.l.b16 %v670
    %v895 = vunpack.c.l.b16 %v671
    %v896 = vunpack.c.l.b16 %v672
    %v897 = vunpack.c.l.b16 %v673
    %v898 = vunpack.c.l.b16 %v674
    %v899 = vunpack.c.l.b16 %v675
    %v900 = vunpack.c.l.b16 %v676
    %v901 = vunpack.c.l.b16 %v677
    %v902 = vunpack.c.l.b16 %v678
    %v903 = vunpack.c.l.b16 %v679
    %v904 = vunpack.c.l.b16 %v680
    %v905 = vunpack.c.l.b16 %v681
    %v906 = vunpack.c.l.b16 %v682
    %v907 = vunpack.c.l.b16 %v683
    %v908 = vunpack.c.l.b16 %v684
    %v909 = vpack.c.b16 %v878, %v877
    %v910 = vpack.c.b16 %v880, %v879
    %v911 = vpack.c.b16 %v882, %v881
    %v912 = vpack.c.b16 %v884, %v883
    %v913 = vpack.c.b16 %v886, %v885
    %v914 = vpack.c.b16 %v888, %v887
    %v915 = vpack.c.b16 %v890, %v889
    %v916 = vpack.c.b16 %v892, %v891
    %v917 = vpack.c.b16 %v894, %v893
    %v918 = vpack.c.b16 %v896, %v895
    %v919 = vpack.c.b16 %v898, %v897
    %v920 = vpack.c.b16 %v900, %v899
    %v921 = vpack.c.b16 %v902, %v901
    %v922 = vpack.c.b16 %v904, %v903
    %v923 = vpack.c.b16 %v906, %v905
    %v924 = vpack.c.b16 %v908, %v907
    %941 = vmatprep.subr.bf16.mxu0 0
    %942 = vmatpush1.bf16.msra.mxu0 %v637
    %943 = vmatprep.subr.bf16.mxu0 0
    %944 = vmatpush1.bf16.msra.mxu0 %v638
    %945 = vmatprep.subr.bf16.mxu0 0
    %946 = vmatpush1.bf16.msra.mxu0 %v639
    %947 = vmatprep.subr.bf16.mxu0 0
    %948 = vmatpush1.bf16.msra.mxu0 %v640
    %949 = vmatprep.subr.bf16.mxu0 0
    %950 = vmatpush1.bf16.msra.mxu0 %v641
    %951 = vmatprep.subr.bf16.mxu0 0
    %952 = vmatpush1.bf16.msra.mxu0 %v642
    %953 = vmatprep.subr.bf16.mxu0 0
    %954 = vmatpush1.bf16.msra.mxu0 %v643
    %955 = vmatprep.subr.bf16.mxu0 0
    %956 = vmatpush1.bf16.msra.mxu0 %v644
    %957 = vmatprep.subr.bf16.mxu0 0
    %958 = vmatpush1.bf16.msra.mxu0 0
    %959 = vmatprep.subr.bf16.mxu0 0
    %960 = vmatpush1.bf16.msra.mxu0 0
    %961 = vmatprep.subr.bf16.mxu0 0
    %962 = vmatpush1.bf16.msra.mxu0 0
    %963 = vmatprep.subr.bf16.mxu0 0
    %964 = vmatpush1.bf16.msra.mxu0 0
    %965 = vmatprep.subr.bf16.mxu0 0
    %966 = vmatpush1.bf16.msra.mxu0 0
    %967 = vmatprep.subr.bf16.mxu0 0
    %968 = vmatpush1.bf16.msra.mxu0 0
    %969 = vmatprep.subr.bf16.mxu0 0
    %970 = vmatpush1.bf16.msra.mxu0 0
    %971 = vmatprep.subr.bf16.mxu0 0
    %972 = vmatpush1.bf16.msra.mxu0 0
    %973 = vmatprep.mubr.bf16.mxu0 0
    %974 = vmatmul.mubr.bf16.gmra.mrb[0].mxu0 %v909
    %v975 = vpop.f32.mrb[0].mxu0
    %v976 = vadd.f32 %v719, %v975
    %v977 = vpop.f32.mrb[0].mxu0
    %v978 = vpop.f32.mrb[0].mxu0
    %v979 = vadd.f32 %v723, %v978
    %v980 = vpop.f32.mrb[0].mxu0
    %981 = vmatprep.mubr.bf16.mxu0 0
    %982 = vmatmul.mubr.bf16.gmra.mrb[0].mxu0 %v910
    %v983 = vpop.f32.mrb[0].mxu0
    %v984 = vadd.f32 %v727, %v983
    %v985 = vpop.f32.mrb[0].mxu0
    %v986 = vpop.f32.mrb[0].mxu0
    %v987 = vadd.f32 %v731, %v986
    %v988 = vpop.f32.mrb[0].mxu0
    %989 = vmatprep.mubr.bf16.mxu0 0
    %990 = vmatmul.mubr.bf16.gmra.mrb[0].mxu0 %v911
    %v991 = vpop.f32.mrb[0].mxu0
    %v992 = vadd.f32 %v735, %v991
    %v993 = vpop.f32.mrb[0].mxu0
    %v994 = vpop.f32.mrb[0].mxu0
    %v995 = vadd.f32 %v739, %v994
    %v996 = vpop.f32.mrb[0].mxu0
    %997 = vmatprep.mubr.bf16.mxu0 0
    %998 = vmatmul.mubr.bf16.gmra.mrb[0].mxu0 %v912
    %v999 = vpop.f32.mrb[0].mxu0
    %v1000 = vadd.f32 %v743, %v999
    %v1001 = vpop.f32.mrb[0].mxu0
    %v1002 = vpop.f32.mrb[0].mxu0
    %v1003 = vadd.f32 %v747, %v1002
    %v1004 = vpop.f32.mrb[0].mxu0
    %1005 = vmatprep.mubr.bf16.mxu0 0
    %1006 = vmatmul.mubr.bf16.gmra.mrb[0].mxu0 %v913
    %v1007 = vpop.f32.mrb[0].mxu0
    %v1008 = vadd.f32 %v751, %v1007
    %v1009 = vpop.f32.mrb[0].mxu0
    %v1010 = vpop.f32.mrb[0].mxu0
    %v1011 = vadd.f32 %v755, %v1010
    %v1012 = vpop.f32.mrb[0].mxu0
    %1013 = vmatprep.mubr.bf16.mxu0 0
    %1014 = vmatmul.mubr.bf16.gmra.mrb[0].mxu0 %v914
    %v1015 = vpop.f32.mrb[0].mxu0
    %v1016 = vadd.f32 %v759, %v1015
    %v1017 = vpop.f32.mrb[0].mxu0
    %v1018 = vpop.f32.mrb[0].mxu0
    %v1019 = vadd.f32 %v763, %v1018
    %v1020 = vpop.f32.mrb[0].mxu0
    %1021 = vmatprep.mubr.bf16.mxu0 0
    %1022 = vmatmul.mubr.bf16.gmra.mrb[0].mxu0 %v915
    %v1023 = vpop.f32.mrb[0].mxu0
    %v1024 = vadd.f32 %v767, %v1023
    %v1025 = vpop.f32.mrb[0].mxu0
    %v1026 = vpop.f32.mrb[0].mxu0
    %v1027 = vadd.f32 %v771, %v1026
    %v1028 = vpop.f32.mrb[0].mxu0
    %1029 = vmatprep.mubr.bf16.mxu0 0
    %1030 = vmatmul.mubr.bf16.gmra.mrb[0].mxu0 %v916
    %v1031 = vpop.f32.mrb[0].mxu0
    %v1032 = vadd.f32 %v775, %v1031
    %v1033 = vpop.f32.mrb[0].mxu0
    %v1034 = vpop.f32.mrb[0].mxu0
    %v1035 = vadd.f32 %v779, %v1034
    %v1036 = vpop.f32.mrb[0].mxu0
    %1037 = vmatprep.mubr.bf16.mxu0 0
    %1038 = vmatmul.mubr.bf16.gmra.mrb[0].mxu0 %v917
    %v1039 = vpop.f32.mrb[0].mxu0
    %v1040 = vadd.f32 %v783, %v1039
    %v1041 = vpop.f32.mrb[0].mxu0
    %v1042 = vpop.f32.mrb[0].mxu0
    %v1043 = vadd.f32 %v787, %v1042
    %v1044 = vpop.f32.mrb[0].mxu0
    %1045 = vmatprep.mubr.bf16.mxu0 0
    %1046 = vmatmul.mubr.bf16.gmra.mrb[0].mxu0 %v918
    %v1047 = vpop.f32.mrb[0].mxu0
    %v1048 = vadd.f32 %v791, %v1047
    %v1049 = vpop.f32.mrb[0].mxu0
    %v1050 = vpop.f32.mrb[0].mxu0
    %v1051 = vadd.f32 %v795, %v1050
    %v1052 = vpop.f32.mrb[0].mxu0
    %1053 = vmatprep.mubr.bf16.mxu0 0
    %1054 = vmatmul.mubr.bf16.gmra.mrb[0].mxu0 %v919
    %v1055 = vpop.f32.mrb[0].mxu0
    %v1056 = vadd.f32 %v799, %v1055
    %v1057 = vpop.f32.mrb[0].mxu0
    %v1058 = vpop.f32.mrb[0].mxu0
    %v1059 = vadd.f32 %v803, %v1058
    %v1060 = vpop.f32.mrb[0].mxu0
    %1061 = vmatprep.mubr.bf16.mxu0 0
    %1062 = vmatmul.mubr.bf16.gmra.mrb[0].mxu0 %v920
    %v1063 = vpop.f32.mrb[0].mxu0
    %v1064 = vadd.f32 %v807, %v1063
    %v1065 = vpop.f32.mrb[0].mxu0
    %v1066 = vpop.f32.mrb[0].mxu0
    %v1067 = vadd.f32 %v811, %v1066
    %v1068 = vpop.f32.mrb[0].mxu0
    %1069 = vmatprep.mubr.bf16.mxu0 0
    %1070 = vmatmul.mubr.bf16.gmra.mrb[0].mxu0 %v921
    %v1071 = vpop.f32.mrb[0].mxu0
    %v1072 = vadd.f32 %v815, %v1071
    %v1073 = vpop.f32.mrb[0].mxu0
    %v1074 = vpop.f32.mrb[0].mxu0
    %v1075 = vadd.f32 %v819, %v1074
    %v1076 = vpop.f32.mrb[0].mxu0
    %1077 = vmatprep.mubr.bf16.mxu0 0
    %1078 = vmatmul.mubr.bf16.gmra.mrb[0].mxu0 %v922
    %v1079 = vpop.f32.mrb[0].mxu0
    %v1080 = vadd.f32 %v823, %v1079
    %v1081 = vpop.f32.mrb[0].mxu0
    %v1082 = vpop.f32.mrb[0].mxu0
    %v1083 = vadd.f32 %v827, %v1082
    %v1084 = vpop.f32.mrb[0].mxu0
    %1085 = vmatprep.mubr.bf16.mxu0 0
    %1086 = vmatmul.mubr.bf16.gmra.mrb[0].mxu0 %v923
    %v1087 = vpop.f32.mrb[0].mxu0
    %v1088 = vadd.f32 %v831, %v1087
    %v1089 = vpop.f32.mrb[0].mxu0
    %v1090 = vpop.f32.mrb[0].mxu0
    %v1091 = vadd.f32 %v835, %v1090
    %v1092 = vpop.f32.mrb[0].mxu0
    %1093 = vmatprep.mubr.bf16.mxu0 0
    %1094 = vmatmul.mubr.bf16.gmra.mrb[0].mxu0 %v924
    %v1095 = vpop.f32.mrb[0].mxu0
    %v1096 = vadd.f32 %v839, %v1095
    %v1097 = vpop.f32.mrb[0].mxu0
    %v1098 = vpop.f32.mrb[0].mxu0
    %v1099 = vadd.f32 %v843, %v1098
    %v1100 = vpop.f32.mrb[0].mxu0
    %1101 = vdwg.mxu0
    %v1102 = vmax.f32 %v976, 0.0
    %v1103 = vmax.f32 %v979, 0.0
    %v1104 = vmax.f32 %v984, 0.0
    %v1105 = vmax.f32 %v987, 0.0
    %v1106 = vmax.f32 %v992, 0.0
    %v1107 = vmax.f32 %v995, 0.0
    %v1108 = vmax.f32 %v1000, 0.0
    %v1109 = vmax.f32 %v1003, 0.0
    %v1110 = vmax.f32 %v1008, 0.0
    %v1111 = vmax.f32 %v1011, 0.0
    %v1112 = vmax.f32 %v1016, 0.0
    %v1113 = vmax.f32 %v1019, 0.0
    %v1114 = vmax.f32 %v1024, 0.0
    %v1115 = vmax.f32 %v1027, 0.0
    %v1116 = vmax.f32 %v1032, 0.0
    %v1117 = vmax.f32 %v1035, 0.0
    %v1118 = vmax.f32 %v1040, 0.0
    %v1119 = vmax.f32 %v1043, 0.0
    %v1120 = vmax.f32 %v1048, 0.0
    %v1121 = vmax.f32 %v1051, 0.0
    %v1122 = vmax.f32 %v1056, 0.0
    %v1123 = vmax.f32 %v1059, 0.0
    %v1124 = vmax.f32 %v1064, 0.0
    %v1125 = vmax.f32 %v1067, 0.0
    %v1126 = vmax.f32 %v1072, 0.0
    %v1127 = vmax.f32 %v1075, 0.0
    %v1128 = vmax.f32 %v1080, 0.0
    %v1129 = vmax.f32 %v1083, 0.0
    %v1130 = vmax.f32 %v1088, 0.0
    %v1131 = vmax.f32 %v1091, 0.0
    %v1132 = vmax.f32 %v1096, 0.0
    %v1133 = vmax.f32 %v1099, 0.0
    %1134 = vset.pattern.permute.xlu0 4
    %1135 = vperm.xlu0 %1134, %v21
    %v1136 = vpop.permute.xlu0 %1135
    %1138 = vset.pattern.permute.xlu0 4
    %1139 = vperm.xlu0 %1138, %v22
    %v1140 = vpop.permute.xlu0 %1139
    %1142 = vset.pattern.permute.xlu0 4
    %1143 = vperm.xlu0 %1142, %v23
    %v1144 = vpop.permute.xlu0 %1143
    %1146 = vset.pattern.permute.xlu0 4
    %1147 = vperm.xlu0 %1146, %v24
    %v1148 = vpop.permute.xlu0 %1147
    %1150 = vset.pattern.permute.xlu0 4
    %1151 = vperm.xlu0 %1150, %v25
    %v1152 = vpop.permute.xlu0 %1151
    %1154 = vset.pattern.permute.xlu0 4
    %1155 = vperm.xlu0 %1154, %v26
    %v1156 = vpop.permute.xlu0 %1155
    %1158 = vset.pattern.permute.xlu0 4
    %1159 = vperm.xlu0 %1158, %v27
    %v1160 = vpop.permute.xlu0 %1159
    %1162 = vset.pattern.permute.xlu0 4
    %1163 = vperm.xlu0 %1162, %v28
    %v1164 = vpop.permute.xlu0 %1163
    %1166 = vset.pattern.permute.xlu0 4
    %1167 = vperm.xlu0 %1166, %v29
    %v1168 = vpop.permute.xlu0 %1167
    %1170 = vset.pattern.permute.xlu0 4
    %1171 = vperm.xlu0 %1170, %v30
    %v1172 = vpop.permute.xlu0 %1171
    %1174 = vset.pattern.permute.xlu0 4
    %1175 = vperm.xlu0 %1174, %v31
    %v1176 = vpop.permute.xlu0 %1175
    %1178 = vset.pattern.permute.xlu0 4
    %1179 = vperm.xlu0 %1178, %v32
    %v1180 = vpop.permute.xlu0 %1179
    %1182 = vset.pattern.permute.xlu0 4
    %1183 = vperm.xlu0 %1182, %v33
    %v1184 = vpop.permute.xlu0 %1183
    %1186 = vset.pattern.permute.xlu0 4
    %1187 = vperm.xlu0 %1186, %v34
    %v1188 = vpop.permute.xlu0 %1187
    %1190 = vset.pattern.permute.xlu0 4
    %1191 = vperm.xlu0 %1190, %v35
    %v1192 = vpop.permute.xlu0 %1191
    %1194 = vset.pattern.permute.xlu0 4
    %1195 = vperm.xlu0 %1194, %v36
    %v1196 = vpop.permute.xlu0 %1195
    %1198 = vset.pattern.permute.xlu0 4
    %1199 = vperm.xlu0 %1198, %v37
    %v1200 = vpop.permute.xlu0 %1199
    %1202 = vset.pattern.permute.xlu0 4
    %1203 = vperm.xlu0 %1202, %v38
    %v1204 = vpop.permute.xlu0 %1203
    %1206 = vset.pattern.permute.xlu0 4
    %1207 = vperm.xlu0 %1206, %v39
    %v1208 = vpop.permute.xlu0 %1207
    %1210 = vset.pattern.permute.xlu0 4
    %1211 = vperm.xlu0 %1210, %v40
    %v1212 = vpop.permute.xlu0 %1211
    %1214 = vset.pattern.permute.xlu0 4
    %1215 = vperm.xlu0 %1214, %v41
    %v1216 = vpop.permute.xlu0 %1215
    %1218 = vset.pattern.permute.xlu0 4
    %1219 = vperm.xlu0 %1218, %v42
    %v1220 = vpop.permute.xlu0 %1219
    %1222 = vset.pattern.permute.xlu0 4
    %1223 = vperm.xlu0 %1222, %v43
    %v1224 = vpop.permute.xlu0 %1223
    %1226 = vset.pattern.permute.xlu0 4
    %1227 = vperm.xlu0 %1226, %v44
    %v1228 = vpop.permute.xlu0 %1227
    %1230 = vset.pattern.permute.xlu0 4
    %1231 = vperm.xlu0 %1230, %v45
    %v1232 = vpop.permute.xlu0 %1231
    %1234 = vset.pattern.permute.xlu0 4
    %1235 = vperm.xlu0 %1234, %v46
    %v1236 = vpop.permute.xlu0 %1235
    %1238 = vset.pattern.permute.xlu0 4
    %1239 = vperm.xlu0 %1238, %v47
    %v1240 = vpop.permute.xlu0 %1239
    %1242 = vset.pattern.permute.xlu0 4
    %1243 = vperm.xlu0 %1242, %v48
    %v1244 = vpop.permute.xlu0 %1243
    %1246 = vset.pattern.permute.xlu0 4
    %1247 = vperm.xlu0 %1246, %v49
    %v1248 = vpop.permute.xlu0 %1247
    %1250 = vset.pattern.permute.xlu0 4
    %1251 = vperm.xlu0 %1250, %v50
    %v1252 = vpop.permute.xlu0 %1251
    %1254 = vset.pattern.permute.xlu0 4
    %1255 = vperm.xlu0 %1254, %v51
    %v1256 = vpop.permute.xlu0 %1255
    %1258 = vset.pattern.permute.xlu0 4
    %1259 = vperm.xlu0 %1258, %v52
    %v1260 = vpop.permute.xlu0 %1259
    %v1294 = vunpack.c.l.b16 %v685
    %v1295 = vunpack.c.l.b16 %v686
    %v1296 = vunpack.c.l.b16 %v687
    %v1297 = vunpack.c.l.b16 %v688
    %v1298 = vunpack.c.l.b16 %v689
    %v1299 = vunpack.c.l.b16 %v690
    %v1300 = vunpack.c.l.b16 %v691
    %v1301 = vunpack.c.l.b16 %v692
    %v1302 = vunpack.c.l.b16 %v693
    %v1303 = vunpack.c.l.b16 %v694
    %v1304 = vunpack.c.l.b16 %v695
    %v1305 = vunpack.c.l.b16 %v696
    %v1306 = vunpack.c.l.b16 %v697
    %v1307 = vunpack.c.l.b16 %v698
    %v1308 = vunpack.c.l.b16 %v699
    %v1309 = vunpack.c.l.b16 %v700
    %v1310 = vunpack.c.l.b16 %v701
    %v1311 = vunpack.c.l.b16 %v702
    %v1312 = vunpack.c.l.b16 %v703
    %v1313 = vunpack.c.l.b16 %v704
    %v1314 = vunpack.c.l.b16 %v705
    %v1315 = vunpack.c.l.b16 %v706
    %v1316 = vunpack.c.l.b16 %v707
    %v1317 = vunpack.c.l.b16 %v708
    %v1318 = vunpack.c.l.b16 %v709
    %v1319 = vunpack.c.l.b16 %v710
    %v1320 = vunpack.c.l.b16 %v711
    %v1321 = vunpack.c.l.b16 %v712
    %v1322 = vunpack.c.l.b16 %v713
    %v1323 = vunpack.c.l.b16 %v714
    %v1324 = vunpack.c.l.b16 %v715
    %v1325 = vunpack.c.l.b16 %v716
    %v1326 = vpack.c.b16 %v1295, %v1294
    %v1327 = vpack.c.b16 %v1297, %v1296
    %v1328 = vpack.c.b16 %v1299, %v1298
    %v1329 = vpack.c.b16 %v1301, %v1300
    %v1330 = vpack.c.b16 %v1303, %v1302
    %v1331 = vpack.c.b16 %v1305, %v1304
    %v1332 = vpack.c.b16 %v1307, %v1306
    %v1333 = vpack.c.b16 %v1309, %v1308
    %v1334 = vpack.c.b16 %v1311, %v1310
    %v1335 = vpack.c.b16 %v1313, %v1312
    %v1336 = vpack.c.b16 %v1315, %v1314
    %v1337 = vpack.c.b16 %v1317, %v1316
    %v1338 = vpack.c.b16 %v1319, %v1318
    %v1339 = vpack.c.b16 %v1321, %v1320
    %v1340 = vpack.c.b16 %v1323, %v1322
    %v1341 = vpack.c.b16 %v1325, %v1324
    %1358 = vmatprep.subr.bf16.mxu0 0
    %1359 = vmatpush1.bf16.msra.mxu0 %v645
    %1360 = vmatprep.subr.bf16.mxu0 0
    %1361 = vmatpush1.bf16.msra.mxu0 %v646
    %1362 = vmatprep.subr.bf16.mxu0 0
    %1363 = vmatpush1.bf16.msra.mxu0 %v647
    %1364 = vmatprep.subr.bf16.mxu0 0
    %1365 = vmatpush1.bf16.msra.mxu0 %v648
    %1366 = vmatprep.subr.bf16.mxu0 0
    %1367 = vmatpush1.bf16.msra.mxu0 %v649
    %1368 = vmatprep.subr.bf16.mxu0 0
    %1369 = vmatpush1.bf16.msra.mxu0 %v650
    %1370 = vmatprep.subr.bf16.mxu0 0
    %1371 = vmatpush1.bf16.msra.mxu0 %v651
    %1372 = vmatprep.subr.bf16.mxu0 0
    %1373 = vmatpush1.bf16.msra.mxu0 %v652
    %1374 = vmatprep.subr.bf16.mxu0 0
    %1375 = vmatpush1.bf16.msra.mxu0 0
    %1376 = vmatprep.subr.bf16.mxu0 0
    %1377 = vmatpush1.bf16.msra.mxu0 0
    %1378 = vmatprep.subr.bf16.mxu0 0
    %1379 = vmatpush1.bf16.msra.mxu0 0
    %1380 = vmatprep.subr.bf16.mxu0 0
    %1381 = vmatpush1.bf16.msra.mxu0 0
    %1382 = vmatprep.subr.bf16.mxu0 0
    %1383 = vmatpush1.bf16.msra.mxu0 0
    %1384 = vmatprep.subr.bf16.mxu0 0
    %1385 = vmatpush1.bf16.msra.mxu0 0
    %1386 = vmatprep.subr.bf16.mxu0 0
    %1387 = vmatpush1.bf16.msra.mxu0 0
    %1388 = vmatprep.subr.bf16.mxu0 0
    %1389 = vmatpush1.bf16.msra.mxu0 0
    %1390 = vmatprep.mubr.bf16.mxu0 0
    %1391 = vmatmul.mubr.bf16.gmra.mrb[0].mxu0 %v1326
    %v1392 = vpop.f32.mrb[0].mxu0
    %v1393 = vadd.f32 %v1136, %v1392
    %v1394 = vpop.f32.mrb[0].mxu0
    %v1395 = vpop.f32.mrb[0].mxu0
    %v1396 = vadd.f32 %v1140, %v1395
    %v1397 = vpop.f32.mrb[0].mxu0
    %1398 = vmatprep.mubr.bf16.mxu0 0
    %1399 = vmatmul.mubr.bf16.gmra.mrb[0].mxu0 %v1327
    %v1400 = vpop.f32.mrb[0].mxu0
    %v1401 = vadd.f32 %v1144, %v1400
    %v1402 = vpop.f32.mrb[0].mxu0
    %v1403 = vpop.f32.mrb[0].mxu0
    %v1404 = vadd.f32 %v1148, %v1403
    %v1405 = vpop.f32.mrb[0].mxu0
    %1406 = vmatprep.mubr.bf16.mxu0 0
    %1407 = vmatmul.mubr.bf16.gmra.mrb[0].mxu0 %v1328
    %v1408 = vpop.f32.mrb[0].mxu0
    %v1409 = vadd.f32 %v1152, %v1408
    %v1410 = vpop.f32.mrb[0].mxu0
    %v1411 = vpop.f32.mrb[0].mxu0
    %v1412 = vadd.f32 %v1156, %v1411
    %v1413 = vpop.f32.mrb[0].mxu0
    %1414 = vmatprep.mubr.bf16.mxu0 0
    %1415 = vmatmul.mubr.bf16.gmra.mrb[0].mxu0 %v1329
    %v1416 = vpop.f32.mrb[0].mxu0
    %v1417 = vadd.f32 %v1160, %v1416
    %v1418 = vpop.f32.mrb[0].mxu0
    %v1419 = vpop.f32.mrb[0].mxu0
    %v1420 = vadd.f32 %v1164, %v1419
    %v1421 = vpop.f32.mrb[0].mxu0
    %1422 = vmatprep.mubr.bf16.mxu0 0
    %1423 = vmatmul.mubr.bf16.gmra.mrb[0].mxu0 %v1330
    %v1424 = vpop.f32.mrb[0].mxu0
    %v1425 = vadd.f32 %v1168, %v1424
    %v1426 = vpop.f32.mrb[0].mxu0
    %v1427 = vpop.f32.mrb[0].mxu0
    %v1428 = vadd.f32 %v1172, %v1427
    %v1429 = vpop.f32.mrb[0].mxu0
    %1430 = vmatprep.mubr.bf16.mxu0 0
    %1431 = vmatmul.mubr.bf16.gmra.mrb[0].mxu0 %v1331
    %v1432 = vpop.f32.mrb[0].mxu0
    %v1433 = vadd.f32 %v1176, %v1432
    %v1434 = vpop.f32.mrb[0].mxu0
    %v1435 = vpop.f32.mrb[0].mxu0
    %v1436 = vadd.f32 %v1180, %v1435
    %v1437 = vpop.f32.mrb[0].mxu0
    %1438 = vmatprep.mubr.bf16.mxu0 0
    %1439 = vmatmul.mubr.bf16.gmra.mrb[0].mxu0 %v1332
    %v1440 = vpop.f32.mrb[0].mxu0
    %v1441 = vadd.f32 %v1184, %v1440
    %v1442 = vpop.f32.mrb[0].mxu0
    %v1443 = vpop.f32.mrb[0].mxu0
    %v1444 = vadd.f32 %v1188, %v1443
    %v1445 = vpop.f32.mrb[0].mxu0
    %1446 = vmatprep.mubr.bf16.mxu0 0
    %1447 = vmatmul.mubr.bf16.gmra.mrb[0].mxu0 %v1333
    %v1448 = vpop.f32.mrb[0].mxu0
    %v1449 = vadd.f32 %v1192, %v1448
    %v1450 = vpop.f32.mrb[0].mxu0
    %v1451 = vpop.f32.mrb[0].mxu0
    %v1452 = vadd.f32 %v1196, %v1451
    %v1453 = vpop.f32.mrb[0].mxu0
    %1454 = vmatprep.mubr.bf16.mxu0 0
    %1455 = vmatmul.mubr.bf16.gmra.mrb[0].mxu0 %v1334
    %v1456 = vpop.f32.mrb[0].mxu0
    %v1457 = vadd.f32 %v1200, %v1456
    %v1458 = vpop.f32.mrb[0].mxu0
    %v1459 = vpop.f32.mrb[0].mxu0
    %v1460 = vadd.f32 %v1204, %v1459
    %v1461 = vpop.f32.mrb[0].mxu0
    %1462 = vmatprep.mubr.bf16.mxu0 0
    %1463 = vmatmul.mubr.bf16.gmra.mrb[0].mxu0 %v1335
    %v1464 = vpop.f32.mrb[0].mxu0
    %v1465 = vadd.f32 %v1208, %v1464
    %v1466 = vpop.f32.mrb[0].mxu0
    %v1467 = vpop.f32.mrb[0].mxu0
    %v1468 = vadd.f32 %v1212, %v1467
    %v1469 = vpop.f32.mrb[0].mxu0
    %1470 = vmatprep.mubr.bf16.mxu0 0
    %1471 = vmatmul.mubr.bf16.gmra.mrb[0].mxu0 %v1336
    %v1472 = vpop.f32.mrb[0].mxu0
    %v1473 = vadd.f32 %v1216, %v1472
    %v1474 = vpop.f32.mrb[0].mxu0
    %v1475 = vpop.f32.mrb[0].mxu0
    %v1476 = vadd.f32 %v1220, %v1475
    %v1477 = vpop.f32.mrb[0].mxu0
    %1478 = vmatprep.mubr.bf16.mxu0 0
    %1479 = vmatmul.mubr.bf16.gmra.mrb[0].mxu0 %v1337
    %v1480 = vpop.f32.mrb[0].mxu0
    %v1481 = vadd.f32 %v1224, %v1480
    %v1482 = vpop.f32.mrb[0].mxu0
    %v1483 = vpop.f32.mrb[0].mxu0
    %v1484 = vadd.f32 %v1228, %v1483
    %v1485 = vpop.f32.mrb[0].mxu0
    %1486 = vmatprep.mubr.bf16.mxu0 0
    %1487 = vmatmul.mubr.bf16.gmra.mrb[0].mxu0 %v1338
    %v1488 = vpop.f32.mrb[0].mxu0
    %v1489 = vadd.f32 %v1232, %v1488
    %v1490 = vpop.f32.mrb[0].mxu0
    %v1491 = vpop.f32.mrb[0].mxu0
    %v1492 = vadd.f32 %v1236, %v1491
    %v1493 = vpop.f32.mrb[0].mxu0
    %1494 = vmatprep.mubr.bf16.mxu0 0
    %1495 = vmatmul.mubr.bf16.gmra.mrb[0].mxu0 %v1339
    %v1496 = vpop.f32.mrb[0].mxu0
    %v1497 = vadd.f32 %v1240, %v1496
    %v1498 = vpop.f32.mrb[0].mxu0
    %v1499 = vpop.f32.mrb[0].mxu0
    %v1500 = vadd.f32 %v1244, %v1499
    %v1501 = vpop.f32.mrb[0].mxu0
    %1502 = vmatprep.mubr.bf16.mxu0 0
    %1503 = vmatmul.mubr.bf16.gmra.mrb[0].mxu0 %v1340
    %v1504 = vpop.f32.mrb[0].mxu0
    %v1505 = vadd.f32 %v1248, %v1504
    %v1506 = vpop.f32.mrb[0].mxu0
    %v1507 = vpop.f32.mrb[0].mxu0
    %v1508 = vadd.f32 %v1252, %v1507
    %v1509 = vpop.f32.mrb[0].mxu0
    %1510 = vmatprep.mubr.bf16.mxu0 0
    %1511 = vmatmul.mubr.bf16.gmra.mrb[0].mxu0 %v1341
    %v1512 = vpop.f32.mrb[0].mxu0
    %v1513 = vadd.f32 %v1256, %v1512
    %v1514 = vpop.f32.mrb[0].mxu0
    %v1515 = vpop.f32.mrb[0].mxu0
    %v1516 = vadd.f32 %v1260, %v1515
    %v1517 = vpop.f32.mrb[0].mxu0
    %1518 = vdwg.mxu0
    %v1519 = vmax.f32 %v1393, 0.0
    %v1520 = vmax.f32 %v1396, 0.0
    %v1521 = vmax.f32 %v1401, 0.0
    %v1522 = vmax.f32 %v1404, 0.0
    %v1523 = vmax.f32 %v1409, 0.0
    %v1524 = vmax.f32 %v1412, 0.0
    %v1525 = vmax.f32 %v1417, 0.0
    %v1526 = vmax.f32 %v1420, 0.0
    %v1527 = vmax.f32 %v1425, 0.0
    %v1528 = vmax.f32 %v1428, 0.0
    %v1529 = vmax.f32 %v1433, 0.0
    %v1530 = vmax.f32 %v1436, 0.0
    %v1531 = vmax.f32 %v1441, 0.0
    %v1532 = vmax.f32 %v1444, 0.0
    %v1533 = vmax.f32 %v1449, 0.0
    %v1534 = vmax.f32 %v1452, 0.0
    %v1535 = vmax.f32 %v1457, 0.0
    %v1536 = vmax.f32 %v1460, 0.0
    %v1537 = vmax.f32 %v1465, 0.0
    %v1538 = vmax.f32 %v1468, 0.0
    %v1539 = vmax.f32 %v1473, 0.0
    %v1540 = vmax.f32 %v1476, 0.0
    %v1541 = vmax.f32 %v1481, 0.0
    %v1542 = vmax.f32 %v1484, 0.0
    %v1543 = vmax.f32 %v1489, 0.0
    %v1544 = vmax.f32 %v1492, 0.0
    %v1545 = vmax.f32 %v1497, 0.0
    %v1546 = vmax.f32 %v1500, 0.0
    %v1547 = vmax.f32 %v1505, 0.0
    %v1548 = vmax.f32 %v1508, 0.0
    %v1549 = vmax.f32 %v1513, 0.0
    %v1550 = vmax.f32 %v1516, 0.0
    %v1551 = vld [vmem:[%s3] sm:$0xff]
    %v1552 = vld [vmem:[%s3 + $0x8] sm:$0xff]
    %v1553 = vld [vmem:[%s3 + $0x10] sm:$0xff]
    %v1554 = vld [vmem:[%s3 + $0x18] sm:$0xff]
    %1555 = vmatprep.subr.mxu0 0.0
    %1556 = vmatpush1.msra.mxu0 %v1519
    %1557 = vmatprep.subr.mxu0 0.0
    %1558 = vmatpush1.msra.mxu0 %v1520
    %1559 = vmatprep.subr.mxu0 0.0
    %1560 = vmatpush1.msra.mxu0 %v1521
    %1561 = vmatprep.subr.mxu0 0.0
    %1562 = vmatpush1.msra.mxu0 %v1522
    %1563 = vmatprep.subr.mxu0 0.0
    %1564 = vmatpush1.msra.mxu0 %v1523
    %1565 = vmatprep.subr.mxu0 0.0
    %1566 = vmatpush1.msra.mxu0 %v1524
    %1567 = vmatprep.subr.mxu0 0.0
    %1568 = vmatpush1.msra.mxu0 %v1525
    %1569 = vmatprep.subr.mxu0 0.0
    %1570 = vmatpush1.msra.mxu0 %v1526
    %1571 = vmatprep.subr.mxu0 0.0
    %1572 = vmatpush1.msra.mxu0 %v1527
    %1573 = vmatprep.subr.mxu0 0.0
    %1574 = vmatpush1.msra.mxu0 %v1528
    %1575 = vmatprep.subr.mxu0 0.0
    %1576 = vmatpush1.msra.mxu0 %v1529
    %1577 = vmatprep.subr.mxu0 0.0
    %1578 = vmatpush1.msra.mxu0 %v1530
    %1579 = vmatprep.subr.mxu0 0.0
    %1580 = vmatpush1.msra.mxu0 %v1531
    %1581 = vmatprep.subr.mxu0 0.0
    %1582 = vmatpush1.msra.mxu0 %v1532
    %1583 = vmatprep.subr.mxu0 0.0
    %1584 = vmatpush1.msra.mxu0 %v1533
    %1585 = vmatprep.subr.mxu0 0.0
    %1586 = vmatpush1.msra.mxu0 %v1534
    %1587 = vmatprep.subr.mxu0 0.0
    %1588 = vmatpush1.msra.mxu0 %v1535
    %1589 = vmatprep.subr.mxu0 0.0
    %1590 = vmatpush1.msra.mxu0 %v1536
    %1591 = vmatprep.subr.mxu0 0.0
    %1592 = vmatpush1.msra.mxu0 %v1537
    %1593 = vmatprep.subr.mxu0 0.0
    %1594 = vmatpush1.msra.mxu0 %v1538
    %1595 = vmatprep.subr.mxu0 0.0
    %1596 = vmatpush1.msra.mxu0 %v1539
    %1597 = vmatprep.subr.mxu0 0.0
    %1598 = vmatpush1.msra.mxu0 %v1540
    %1599 = vmatprep.subr.mxu0 0.0
    %1600 = vmatpush1.msra.mxu0 %v1541
    %1601 = vmatprep.subr.mxu0 0.0
    %1602 = vmatpush1.msra.mxu0 %v1542
    %1603 = vmatprep.subr.mxu0 0.0
    %1604 = vmatpush1.msra.mxu0 %v1543
    %1605 = vmatprep.subr.mxu0 0.0
    %1606 = vmatpush1.msra.mxu0 %v1544
    %1607 = vmatprep.subr.mxu0 0.0
    %1608 = vmatpush1.msra.mxu0 %v1545
    %1609 = vmatprep.subr.mxu0 0.0
    %1610 = vmatpush1.msra.mxu0 %v1546
    %1611 = vmatprep.subr.mxu0 0.0
    %1612 = vmatpush1.msra.mxu0 %v1547
    %1613 = vmatprep.subr.mxu0 0.0
    %1614 = vmatpush1.msra.mxu0 %v1548
    %1615 = vmatprep.subr.mxu0 0.0
    %1616 = vmatpush1.msra.mxu0 %v1549
    %1617 = vmatprep.subr.mxu0 0.0
    %1618 = vmatpush1.msra.mxu0 %v1550
    %1619 = vmatprep.mubr.f32.mxu0 %v1554
    %1620 = vmatmul.mubr.f32.gmra.mrb[0].mxu0 %v1553
    %v1621 = vpop.f32.mrb[0].mxu0
    %v1622 = vadd.f32 0.0, %v1621
    %v1623 = vpop.f32.mrb[0].mxu0
    %1624 = vdwg.mxu0
    %1625 = vmatprep.subr.mxu0 0.0
    %1626 = vmatpush1.msra.mxu0 %v1102
    %1627 = vmatprep.subr.mxu0 0.0
    %1628 = vmatpush1.msra.mxu0 %v1103
    %1629 = vmatprep.subr.mxu0 0.0
    %1630 = vmatpush1.msra.mxu0 %v1104
    %1631 = vmatprep.subr.mxu0 0.0
    %1632 = vmatpush1.msra.mxu0 %v1105
    %1633 = vmatprep.subr.mxu0 0.0
    %1634 = vmatpush1.msra.mxu0 %v1106
    %1635 = vmatprep.subr.mxu0 0.0
    %1636 = vmatpush1.msra.mxu0 %v1107
    %1637 = vmatprep.subr.mxu0 0.0
    %1638 = vmatpush1.msra.mxu0 %v1108
    %1639 = vmatprep.subr.mxu0 0.0
    %1640 = vmatpush1.msra.mxu0 %v1109
    %1641 = vmatprep.subr.mxu0 0.0
    %1642 = vmatpush1.msra.mxu0 %v1110
    %1643 = vmatprep.subr.mxu0 0.0
    %1644 = vmatpush1.msra.mxu0 %v1111
    %1645 = vmatprep.subr.mxu0 0.0
    %1646 = vmatpush1.msra.mxu0 %v1112
    %1647 = vmatprep.subr.mxu0 0.0
    %1648 = vmatpush1.msra.mxu0 %v1113
    %1649 = vmatprep.subr.mxu0 0.0
    %1650 = vmatpush1.msra.mxu0 %v1114
    %1651 = vmatprep.subr.mxu0 0.0
    %1652 = vmatpush1.msra.mxu0 %v1115
    %1653 = vmatprep.subr.mxu0 0.0
    %1654 = vmatpush1.msra.mxu0 %v1116
    %1655 = vmatprep.subr.mxu0 0.0
    %1656 = vmatpush1.msra.mxu0 %v1117
    %1657 = vmatprep.subr.mxu0 0.0
    %1658 = vmatpush1.msra.mxu0 %v1118
    %1659 = vmatprep.subr.mxu0 0.0
    %1660 = vmatpush1.msra.mxu0 %v1119
    %1661 = vmatprep.subr.mxu0 0.0
    %1662 = vmatpush1.msra.mxu0 %v1120
    %1663 = vmatprep.subr.mxu0 0.0
    %1664 = vmatpush1.msra.mxu0 %v1121
    %1665 = vmatprep.subr.mxu0 0.0
    %1666 = vmatpush1.msra.mxu0 %v1122
    %1667 = vmatprep.subr.mxu0 0.0
    %1668 = vmatpush1.msra.mxu0 %v1123
    %1669 = vmatprep.subr.mxu0 0.0
    %1670 = vmatpush1.msra.mxu0 %v1124
    %1671 = vmatprep.subr.mxu0 0.0
    %1672 = vmatpush1.msra.mxu0 %v1125
    %1673 = vmatprep.subr.mxu0 0.0
    %1674 = vmatpush1.msra.mxu0 %v1126
    %1675 = vmatprep.subr.mxu0 0.0
    %1676 = vmatpush1.msra.mxu0 %v1127
    %1677 = vmatprep.subr.mxu0 0.0
    %1678 = vmatpush1.msra.mxu0 %v1128
    %1679 = vmatprep.subr.mxu0 0.0
    %1680 = vmatpush1.msra.mxu0 %v1129
    %1681 = vmatprep.subr.mxu0 0.0
    %1682 = vmatpush1.msra.mxu0 %v1130
    %1683 = vmatprep.subr.mxu0 0.0
    %1684 = vmatpush1.msra.mxu0 %v1131
    %1685 = vmatprep.subr.mxu0 0.0
    %1686 = vmatpush1.msra.mxu0 %v1132
    %1687 = vmatprep.subr.mxu0 0.0
    %1688 = vmatpush1.msra.mxu0 %v1133
    %1689 = vmatprep.mubr.f32.mxu0 %v1552
    %1690 = vmatmul.mubr.f32.gmra.mrb[0].mxu0 %v1551
    %v1691 = vpop.f32.mrb[0].mxu0
    %v1692 = vadd.f32 %v1622, %v1691
    %v1693 = vpop.f32.mrb[0].mxu0
    %1694 = vdwg.mxu0
    %1695 = vset.pattern.permute.xlu0 5
    %1696 = vperm.xlu0 %1695, %v21
    %v1697 = vpop.permute.xlu0 %1696
    %v1699 = vadd.f32 %v1692, %v1697
    %vm1700 = vcmask 64512
    %1701 = vst.msk [vmem:[#allocation2] sm:$0xff] %vm1700, %v1699
    // Predicated region
    $region18: #{tpu_custom_call.1} parent=1 // pred_check
      _
    $region19: #{tpu_custom_call.1} parent=1 // pred_check_branch
      %1703 = sbr.rel (0) target = $region21
    $region20: #{tpu_custom_call.1} parent=1 // pred_region
      %s1705 = ssub.s32 128, 128
      %1706 = vsyncadd [#allocation3], %s1705
      %s1708 = sshll.u32 [#allocation2], 4
      %s1709 = int_to_ptr.vmem [resolvable:$true] %s1708
      %1711 = dma.vmem_to_hbm [thread:$0]  %s1709, 128, %s4, [#allocation3]
    $region21: #{tpu_custom_call.1} parent=1 // pred_fallthru
      _
    // Predicated region
    $region22: #{tpu_custom_call.1} parent=1 // pred_check
      _
    $region23: #{tpu_custom_call.1} parent=1 // pred_check_branch
      %1713 = sbr.rel (0) target = $region25
    $region24: #{tpu_custom_call.1} parent=1 // pred_region
      %1714 = dma.done [#allocation3], 128
    $region25: #{tpu_custom_call.1} parent=1 // pred_fallthru
      _
    %1715 = vsyncpa [#allocation3], 1

</llo_original>
